<compile_context>
chip_gen: v5e
topology: v5e:2x2
jax: 0.10.0
libtpu: 0.0.40
codegen_flags: <defaults>
</compile_context>

<pallas_src>
import functools

import jax
import jax.numpy as jnp
from jax.experimental import pallas as pl
from jax.experimental.pallas import tpu as pltpu

LN_EPS = 1e-5  # PyTorch nn.LayerNorm default


def _round_up(v, m):
    return ((v + m - 1) // m) * m


def _pick_elementwise_dtype():
    """bf16 LN/tanh math only on chips with bf16 VALU/EUP (v6e / v7x)."""
    try:
        kind = jax.devices()[0].device_kind.lower()
    except Exception:
        kind = ""
    if ("v6" in kind) or ("v7" in kind):
        return jnp.bfloat16
    return jnp.float32


def _edge_mlp_kernel(nb_layers, elem_dtype, edge_ref, *refs):
    """refs = [wT_0, ..., wT_{L-1}, vecs, out_ref].

    Layout: edge_ref [F_in, T] bf16  (features on sublanes, edges on lanes)
            wT_l     [H, in_l] bf16  (pre-transposed weights)
            vecs     [H, 3L+2] f32   columns = (b_l, gamma_l, beta_l)*L, w_out, b_out
            out_ref  [1, 1, T] f32
    """
    out_ref = refs[-1]
    vecs_ref = refs[-2]
    w_refs = refs[:-2]

    vecs = vecs_ref[...]                               # [H, 3L+2] f32
    h = edge_ref[...]                                  # [F_in, T] bf16

    for l in range(nb_layers):
        wT = w_refs[l][...]                            # [H, in_l] bf16
        b = vecs[:, 3 * l + 0:3 * l + 1]               # [H, 1] f32
        gamma = vecs[:, 3 * l + 1:3 * l + 2].astype(elem_dtype)   # [H, 1]
        beta = vecs[:, 3 * l + 2:3 * l + 3].astype(elem_dtype)    # [H, 1]

        # Linear on the MXU: bf16 x bf16 -> f32 accumulate.  [H, in] @ [in, T]
        a = jnp.dot(wT, h.astype(jnp.bfloat16),
                    preferred_element_type=jnp.float32) + b        # [H, T] f32

        # LayerNorm stats over the feature (sublane) axis, f32, single pass:
        # var = E[h^2] - E[h]^2.
        mean = jnp.mean(a, axis=0, keepdims=True)                  # [1, T]
        mean_sq = jnp.mean(a * a, axis=0, keepdims=True)           # [1, T]
        var = jnp.maximum(mean_sq - mean * mean, 0.0)
        inv = jax.lax.rsqrt(var + LN_EPS)                          # [1, T]

        # Elementwise chain (normalize, affine, tanh) in elem_dtype
        # (bf16 on v6e/v7x, f32 on v5e).
        hn = (a.astype(elem_dtype) - mean.astype(elem_dtype)) * inv.astype(elem_dtype)
        h = jnp.tanh(hn * gamma + beta)                            # [H, T]

    # Final Linear(H, 1) as a VPU multiply + sublane reduce -> lane-dense [1, T]
    # (avoids a [T, 1] masked-store output and a 1/128-lane MXU dot).
    w_out = vecs[:, 3 * nb_layers:3 * nb_layers + 1]               # [H, 1] f32
    b_out = vecs[0:1, 3 * nb_layers + 1:3 * nb_layers + 2]         # [1, 1] f32
    out = jnp.sum(h.astype(jnp.float32) * w_out, axis=0, keepdims=True) + b_out
    out_ref[...] = out[None, :, :].astype(out_ref.dtype)           # [1, 1, T]


def edge_network_forward(x, edge_index, params, *, tile_edges=None):
    """x: [N, input_dim], edge_index: [2, E] int32.

    params: dict with
      'hidden': list of (w [in,H], b [1,H], gamma [1,H], beta [1,H])
      'out':    (w_out [H,1], b_out [1,1])
    Returns edge scores (pre-sigmoid logits) of shape [E].
    """
    start = edge_index[0].astype(jnp.int32)
    end = edge_index[1].astype(jnp.int32)
    E = int(start.shape[0])
    input_dim = x.shape[1]
    F_in = 2 * input_dim

    hidden = params["hidden"]
    w_out, b_out = params["out"]
    L = len(hidden)
    assert L >= 1, "EdgeNetwork requires at least one hidden layer"
    H = hidden[0][0].shape[1]

    # Tile choice: large enough to amortize the ~0.35 us per-step overhead,
    # while keeping >= 2 grid steps so both v7x TensorCores get work.
    if tile_edges is None:
        tile_edges = min(8192, max(512, _round_up(pl.cdiv(E, 2), 512)))
    E_pad = _round_up(E, tile_edges)
    num_tiles = E_pad // tile_edges

    # Pad the cheap (4 B/edge) index vectors — NOT the gathered feature tensor —
    # so the [F_in, E_pad] edge tensor is born padded (no extra HBM copy).
    if E_pad != E:
        pad = E_pad - E
        start = jnp.pad(start, (0, pad))   # index 0 is always valid
        end = jnp.pad(end, (0, pad))

    # Whole-row gathers (DMA-friendly) + concat, then one transpose to the
    # lane-dense [F_in, E_pad] layout the kernel wants.  bf16 halves HBM traffic.
    xb = x.astype(jnp.bfloat16)
    edge_inputs = jnp.concatenate([xb[start], xb[end]], axis=1)    # [E_pad, F_in]
    edge_inputs_T = edge_inputs.T                                  # [F_in, E_pad]

    # Pre-transpose / cast weights ONCE in the wrapper (bf16 MXU operands).
    wT_list = [w.T.astype(jnp.bfloat16) for (w, _, _, _) in hidden]   # [H, in_l]

    # Stack all per-layer vector params + final-layer weight/bias into a single
    # [H, 3L+2] f32 ref (one small DMA instead of many padded (1,H) refs).
    cols = []
    for (_, b, g, be) in hidden:
        cols += [b.reshape(H), g.reshape(H), be.reshape(H)]
    cols.append(w_out.reshape(H))
    cols.append(jnp.full((H,), jnp.reshape(b_out, ())))
    vecs = jnp.stack(cols, axis=1).astype(jnp.float32)                # [H, 3L+2]

    elem_dtype = _pick_elementwise_dtype()
    kernel = functools.partial(_edge_mlp_kernel, L, elem_dtype)

    in_specs = [pl.BlockSpec((F_in, tile_edges), lambda i: (0, i))]
    # Constant-index param blocks: the pipeline re-fetches the same block, so
    # double-buffering them is negligible at H=32.
    # TODO(synk): revisit pipeline_mode=pl.Buffered(1) here if hidden_dim grows large.
    in_specs += [pl.BlockSpec(wt.shape, lambda i: (0, 0)) for wt in wT_list]
    in_specs.append(pl.BlockSpec(vecs.shape, lambda i: (0, 0)))

    param_bytes = sum(int(p.size) for p in wT_list) * 2 + int(vecs.size) * 4
    cost = pl.CostEstimate(
        flops=2 * E_pad * (F_in * H + max(L - 1, 0) * H * H + H),
        transcendentals=E_pad * H * L,
        bytes_accessed=E_pad * (F_in * 2 + 4) + param_bytes,
    )

    out = pl.pallas_call(
        kernel,
        out_shape=jax.ShapeDtypeStruct((num_tiles, 1, tile_edges), jnp.float32),
        grid_spec=pltpu.PrefetchScalarGridSpec(
            num_scalar_prefetch=0,
            grid=(num_tiles,),
            in_specs=in_specs,
            # Output block's last two dims equal the array's last two dims ->
            # fully aligned, lane-dense stores.
            out_specs=pl.BlockSpec((1, 1, tile_edges), lambda i: (i, 0, 0)),
        ),
        compiler_params=pltpu.CompilerParams(
            dimension_semantics=("parallel",),
        ),
        cost_estimate=cost,
    )(edge_inputs_T, *wT_list, vecs)

    # Row-major flatten recovers edge order; drop padded edges (squeeze(-1)).
    return out.reshape(E_pad)[:E]


def _reference_forward(x, edge_index, params):
    """Pure-JAX f32 reference mirroring the PyTorch module."""
    start, end = edge_index[0], edge_index[1]
    h = jnp.concatenate([x[start], x[end]], axis=1).astype(jnp.float32)
    for (w, b, g, be) in params["hidden"]:
        h = h @ w + b
        mean = jnp.mean(h, axis=-1, keepdims=True)
        var = jnp.mean((h - mean) ** 2, axis=-1, keepdims=True)
        h = (h - mean) * jax.lax.rsqrt(var + LN_EPS)
        h = h * g + be
        h = jnp.tanh(h)
    w_out, b_out = params["out"]
    return (h @ w_out + b_out)[:, 0]


def init_params(key, input_dim, hidden_dim, nb_layers):
    """Deterministic synthetic parameters (shapes from the module __init__)."""
    dims = [2 * input_dim] + [hidden_dim] * nb_layers
    hidden = []
    for l in range(nb_layers):
        key, kw, kb = jax.random.split(key, 3)
        w = 0.1 * jax.random.normal(kw, (dims[l], dims[l + 1]), jnp.float32)
        b = 0.1 * jax.random.normal(kb, (1, dims[l + 1]), jnp.float32)
        gamma = jnp.ones((1, dims[l + 1]), jnp.float32)
        beta = jnp.zeros((1, dims[l + 1]), jnp.float32)
        hidden.append((w, b, gamma, beta))
    key, kw, kb = jax.random.split(key, 3)
    w_out = 0.1 * jax.random.normal(kw, (hidden_dim, 1), jnp.float32)
    b_out = 0.1 * jax.random.normal(kb, (1, 1), jnp.float32)
    return {"hidden": hidden, "out": (w_out, b_out)}


if __name__ == "__main__":
    input_dim = 4
    hidden_dim = 32
    nb_layers = 2
    num_nodes = 128
    num_edges = 2000  # not a multiple of the tile -> exercises padding; 2 tiles

    key = jax.random.PRNGKey(0)
    kx, ke, kp = jax.random.split(key, 3)

    x = jax.random.normal(kx, (num_nodes, input_dim), jnp.float32)
    edge_index = jax.random.randint(ke, (2, num_edges), 0, num_nodes, jnp.int32)
    params = init_params(kp, input_dim, hidden_dim, nb_layers)

    out = edge_network_forward(x, edge_index, params)
    out = jax.block_until_ready(out)

    ref = _reference_forward(x, edge_index, params)
    assert out.shape == (num_edges,)
    # Tolerance loosened vs a pure-f32 run: edge tensor / weights are bf16 and
    # the LN/tanh chain runs in bf16 on v6e/v7x.
    assert jnp.allclose(out, ref, atol=3e-2, rtol=3e-2), "mismatch vs reference"

    print("KERNEL_OK")
</pallas_src>

<mosaic_0001>
module attributes {stable_mosaic.version = 11 : i64} {
  func.func @_edge_mlp_kernel(%arg0: i32, %arg1: memref<8x1024xbf16, #tpu.memory_space<vmem>>, %arg2: memref<32x8xbf16, #tpu.memory_space<vmem>>, %arg3: memref<32x32xbf16, #tpu.memory_space<vmem>>, %arg4: memref<32x8xf32, #tpu.memory_space<vmem>>, %arg5: memref<1x1x1024xf32, #tpu.memory_space<vmem>>) attributes {dimension_semantics = [#tpu.dimension_semantics<parallel>], iteration_bounds = array<i64: 2>, scalar_prefetch = 0 : i64, scratch_operands = 0 : i64, tpu.core_type = #tpu.core_type<tc>, window_params = [{transform_indices = @transform_0, window_bounds = array<i64: 8, 1024>}, {pipeline_mode = #tpu.pipeline_mode<synchronous>, transform_indices = @transform_1, window_bounds = array<i64: 32, 8>}, {pipeline_mode = #tpu.pipeline_mode<synchronous>, transform_indices = @transform_2, window_bounds = array<i64: 32, 32>}, {pipeline_mode = #tpu.pipeline_mode<synchronous>, transform_indices = @transform_3, window_bounds = array<i64: 32, 8>}, {transform_indices = @transform_4, window_bounds = array<i64: 1, 1, 1024>}]} {
    %c0 = arith.constant 0 : index
    %c0_0 = arith.constant 0 : index
    %0 = vector.load %arg4[%c0, %c0_0] : memref<32x8xf32, #tpu.memory_space<vmem>>, vector<32x8xf32>
    %c0_1 = arith.constant 0 : index
    %c0_2 = arith.constant 0 : index
    %1 = vector.load %arg1[%c0_1, %c0_2] : memref<8x1024xbf16, #tpu.memory_space<vmem>>, vector<8x1024xbf16>
    %c0_3 = arith.constant 0 : index
    %c0_4 = arith.constant 0 : index
    %2 = vector.load %arg2[%c0_3, %c0_4] : memref<32x8xbf16, #tpu.memory_space<vmem>>, vector<32x8xbf16>
    %3 = vector.extract_strided_slice %0 {offsets = [0, 0], sizes = [32, 1], strides = [1, 1]} : vector<32x8xf32> to vector<32x1xf32>
    %4 = vector.extract_strided_slice %0 {offsets = [0, 1], sizes = [32, 1], strides = [1, 1]} : vector<32x8xf32> to vector<32x1xf32>
    %5 = vector.extract_strided_slice %0 {offsets = [0, 2], sizes = [32, 1], strides = [1, 1]} : vector<32x8xf32> to vector<32x1xf32>
    %cst = arith.constant dense<0.000000e+00> : vector<32x1024xf32>
    %6 = tpu.matmul %2, %1, %cst {dimension_numbers = #tpu.dot_dimension_numbers<[1], [0], [0], [1], [0, 0, 1, 1], [], []>} : vector<32x8xbf16>, vector<8x1024xbf16>, vector<32x1024xf32> -> vector<32x1024xf32>
    %7 = vector.broadcast %3 : vector<32x1xf32> to vector<32x1024xf32>
    %8 = arith.addf %6, %7 : vector<32x1024xf32>
    %cst_5 = arith.constant dense<0.000000e+00> : vector<1024xf32>
    %9 = vector.multi_reduction <add>, %8, %cst_5 [0] : vector<32x1024xf32> to vector<1024xf32>
    %10 = vector.shape_cast %9 : vector<1024xf32> to vector<1x1024xf32>
    %cst_6 = arith.constant 3.200000e+01 : f32
    %11 = vector.broadcast %cst_6 : f32 to vector<1x1024xf32>
    %12 = arith.divf %10, %11 : vector<1x1024xf32>
    %13 = arith.mulf %8, %8 : vector<32x1024xf32>
    %cst_7 = arith.constant dense<0.000000e+00> : vector<1024xf32>
    %14 = vector.multi_reduction <add>, %13, %cst_7 [0] : vector<32x1024xf32> to vector<1024xf32>
    %15 = vector.shape_cast %14 : vector<1024xf32> to vector<1x1024xf32>
    %cst_8 = arith.constant 3.200000e+01 : f32
    %16 = vector.broadcast %cst_8 : f32 to vector<1x1024xf32>
    %17 = arith.divf %15, %16 : vector<1x1024xf32>
    %18 = arith.mulf %12, %12 : vector<1x1024xf32>
    %19 = arith.subf %17, %18 : vector<1x1024xf32>
    %cst_9 = arith.constant 0.000000e+00 : f32
    %20 = vector.broadcast %cst_9 : f32 to vector<1x1024xf32>
    %21 = arith.maximumf %19, %20 : vector<1x1024xf32>
    %cst_10 = arith.constant 9.99999974E-6 : f32
    %22 = vector.broadcast %cst_10 : f32 to vector<1x1024xf32>
    %23 = arith.addf %21, %22 : vector<1x1024xf32>
    %24 = math.rsqrt %23 : vector<1x1024xf32>
    %25 = vector.broadcast %12 : vector<1x1024xf32> to vector<32x1024xf32>
    %26 = arith.subf %8, %25 : vector<32x1024xf32>
    %27 = vector.broadcast %24 : vector<1x1024xf32> to vector<32x1024xf32>
    %28 = arith.mulf %26, %27 : vector<32x1024xf32>
    %29 = vector.broadcast %4 : vector<32x1xf32> to vector<32x1024xf32>
    %30 = arith.mulf %28, %29 : vector<32x1024xf32>
    %31 = vector.broadcast %5 : vector<32x1xf32> to vector<32x1024xf32>
    %32 = arith.addf %30, %31 : vector<32x1024xf32>
    %33 = math.tanh %32 : vector<32x1024xf32>
    %c0_11 = arith.constant 0 : index
    %c0_12 = arith.constant 0 : index
    %34 = vector.load %arg3[%c0_11, %c0_12] : memref<32x32xbf16, #tpu.memory_space<vmem>>, vector<32x32xbf16>
    %35 = vector.extract_strided_slice %0 {offsets = [0, 3], sizes = [32, 1], strides = [1, 1]} : vector<32x8xf32> to vector<32x1xf32>
    %36 = vector.extract_strided_slice %0 {offsets = [0, 4], sizes = [32, 1], strides = [1, 1]} : vector<32x8xf32> to vector<32x1xf32>
    %37 = vector.extract_strided_slice %0 {offsets = [0, 5], sizes = [32, 1], strides = [1, 1]} : vector<32x8xf32> to vector<32x1xf32>
    %38 = arith.truncf %33 : vector<32x1024xf32> to vector<32x1024xbf16>
    %cst_13 = arith.constant dense<0.000000e+00> : vector<32x1024xf32>
    %39 = tpu.matmul %34, %38, %cst_13 {dimension_numbers = #tpu.dot_dimension_numbers<[1], [0], [0], [1], [0, 0, 1, 1], [], []>} : vector<32x32xbf16>, vector<32x1024xbf16>, vector<32x1024xf32> -> vector<32x1024xf32>
    %40 = vector.broadcast %35 : vector<32x1xf32> to vector<32x1024xf32>
    %41 = arith.addf %39, %40 : vector<32x1024xf32>
    %cst_14 = arith.constant dense<0.000000e+00> : vector<1024xf32>
    %42 = vector.multi_reduction <add>, %41, %cst_14 [0] : vector<32x1024xf32> to vector<1024xf32>
    %43 = vector.shape_cast %42 : vector<1024xf32> to vector<1x1024xf32>
    %cst_15 = arith.constant 3.200000e+01 : f32
    %44 = vector.broadcast %cst_15 : f32 to vector<1x1024xf32>
    %45 = arith.divf %43, %44 : vector<1x1024xf32>
    %46 = arith.mulf %41, %41 : vector<32x1024xf32>
    %cst_16 = arith.constant dense<0.000000e+00> : vector<1024xf32>
    %47 = vector.multi_reduction <add>, %46, %cst_16 [0] : vector<32x1024xf32> to vector<1024xf32>
    %48 = vector.shape_cast %47 : vector<1024xf32> to vector<1x1024xf32>
    %cst_17 = arith.constant 3.200000e+01 : f32
    %49 = vector.broadcast %cst_17 : f32 to vector<1x1024xf32>
    %50 = arith.divf %48, %49 : vector<1x1024xf32>
    %51 = arith.mulf %45, %45 : vector<1x1024xf32>
    %52 = arith.subf %50, %51 : vector<1x1024xf32>
    %cst_18 = arith.constant 0.000000e+00 : f32
    %53 = vector.broadcast %cst_18 : f32 to vector<1x1024xf32>
    %54 = arith.maximumf %52, %53 : vector<1x1024xf32>
    %cst_19 = arith.constant 9.99999974E-6 : f32
    %55 = vector.broadcast %cst_19 : f32 to vector<1x1024xf32>
    %56 = arith.addf %54, %55 : vector<1x1024xf32>
    %57 = math.rsqrt %56 : vector<1x1024xf32>
    %58 = vector.broadcast %45 : vector<1x1024xf32> to vector<32x1024xf32>
    %59 = arith.subf %41, %58 : vector<32x1024xf32>
    %60 = vector.broadcast %57 : vector<1x1024xf32> to vector<32x1024xf32>
    %61 = arith.mulf %59, %60 : vector<32x1024xf32>
    %62 = vector.broadcast %36 : vector<32x1xf32> to vector<32x1024xf32>
    %63 = arith.mulf %61, %62 : vector<32x1024xf32>
    %64 = vector.broadcast %37 : vector<32x1xf32> to vector<32x1024xf32>
    %65 = arith.addf %63, %64 : vector<32x1024xf32>
    %66 = math.tanh %65 : vector<32x1024xf32>
    %67 = vector.extract_strided_slice %0 {offsets = [0, 6], sizes = [32, 1], strides = [1, 1]} : vector<32x8xf32> to vector<32x1xf32>
    %68 = vector.extract_strided_slice %0 {offsets = [0, 7], sizes = [1, 1], strides = [1, 1]} : vector<32x8xf32> to vector<1x1xf32>
    %69 = vector.broadcast %67 : vector<32x1xf32> to vector<32x1024xf32>
    %70 = arith.mulf %66, %69 : vector<32x1024xf32>
    %cst_20 = arith.constant dense<0.000000e+00> : vector<1024xf32>
    %71 = vector.multi_reduction <add>, %70, %cst_20 [0] : vector<32x1024xf32> to vector<1024xf32>
    %72 = vector.shape_cast %71 : vector<1024xf32> to vector<1x1024xf32>
    %73 = vector.broadcast %68 : vector<1x1xf32> to vector<1x1024xf32>
    %74 = arith.addf %72, %73 : vector<1x1024xf32>
    %75 = vector.shape_cast %74 : vector<1x1024xf32> to vector<1x1x1024xf32>
    %c0_21 = arith.constant 0 : index
    %c0_22 = arith.constant 0 : index
    %c0_23 = arith.constant 0 : index
    %76 = vector.load %arg5[%c0_21, %c0_22, %c0_23] : memref<1x1x1024xf32, #tpu.memory_space<vmem>>, vector<1x1x1024xf32>
    tpu.vector_store %arg5[%c0_21, %c0_22, %c0_23], %75 {strides = array<i32>} : memref<1x1x1024xf32, #tpu.memory_space<vmem>>, vector<1x1x1024xf32>,
    return
  }
  func.func @transform_0(%arg0: i32) -> (i32, i32) {
    %c0_i32 = arith.constant 0 : i32
    %c0_i32_0 = arith.constant 0 : i32
    return %c0_i32, %arg0 : i32, i32
  }
  func.func @transform_1(%arg0: i32) -> (i32, i32) {
    %c0_i32 = arith.constant 0 : i32
    %c0_i32_0 = arith.constant 0 : i32
    %c0_i32_1 = arith.constant 0 : i32
    return %c0_i32, %c0_i32_0 : i32, i32
  }
  func.func @transform_2(%arg0: i32) -> (i32, i32) {
    %c0_i32 = arith.constant 0 : i32
    %c0_i32_0 = arith.constant 0 : i32
    %c0_i32_1 = arith.constant 0 : i32
    return %c0_i32, %c0_i32_0 : i32, i32
  }
  func.func @transform_3(%arg0: i32) -> (i32, i32) {
    %c0_i32 = arith.constant 0 : i32
    %c0_i32_0 = arith.constant 0 : i32
    %c0_i32_1 = arith.constant 0 : i32
    return %c0_i32, %c0_i32_0 : i32, i32
  }
  func.func @transform_4(%arg0: i32) -> (i32, i32, i32) {
    %c0_i32 = arith.constant 0 : i32
    %c0_i32_0 = arith.constant 0 : i32
    %c0_i32_1 = arith.constant 0 : i32
    return %arg0, %c0_i32, %c0_i32_0 : i32, i32, i32
  }
}

</mosaic_0001>

<llo_original>
// kernel: tpu_custom_call.1
$region0: #{tpu_custom_call.1}
  #allocation0 [shape = 'u32[]', space=smem, size = 0x4, offset = 0x4, fixed_abs, tag = 'smem constant byte address 0x4 - core index']
  #allocation1 [shape = 'u32[72,128]{1,0:T(1,128)}', space=vmem, size = 0x9000, scoped, tag = 'internal scratch']
  %s0 = inlined_call_operand.hbm [shape: bf16[8,2048], index: 0, kind: input, shape index: {}]
  %s1 = inlined_call_operand.vmem [shape: bf16[32,8], index: 1, kind: input, shape index: {}]
  %s2 = inlined_call_operand.vmem [shape: bf16[32,32], index: 2, kind: input, shape index: {}]
  %s3 = inlined_call_operand.vmem [shape: f32[32,8], index: 3, kind: input, shape index: {}]
  %s4 = inlined_call_operand.hbm [shape: f32[2,1,1024], index: 4, kind: output, shape index: {}]
  %s5 = sld [smem:[#allocation0]]
  $region53: #{tpu_custom_call.1} parent=0
    _
  %s7 = ssub.s32 1, %s5
  %s8 = scalar_select 0, %s7, %s5
  $region1: #{tpu_custom_call.1} parent=0
    #allocation2 [shape = 'u8[32768]{0}', space=vmem, size = 0x8000, scoped, tag = 'input window, operand 0']
    #allocation3 [shape = 's32[2]{0}', space=sflag, size = 0x8, scoped, tag = 'scoped memory for tpu_custom_call.1']
    #allocation4 [shape = 's32[2]{0}', space=sflag, size = 0x8, scoped, tag = 'scoped memory for tpu_custom_call.1']
    #allocation5 [shape = 'u8[8192]{0}', space=vmem, size = 0x2000, scoped, tag = 'output window, operand 0']
    %9 = vsyncpa [#allocation3], 0
    %s10 = scalar_lea.sflag [#allocation3], 1
    %11 = vsyncpa %s10, 0
    %12 = vsyncpa [#allocation4], 0
    %s13 = scalar_lea.sflag [#allocation4], 1
    %14 = vsyncpa %s13, 0
    loop: start=0, step=1, limit=4
    $region2: #{tpu_custom_call.1} parent=1 // loop_pre_header
      _
    $region3: #{tpu_custom_call.1} parent=1 // loop_header
      %s16 = sphi 0, %s20
      %p17 = scmp.ge.s32.totalorder %s16, 4
      %s26 = sphi 0, %s28
      %s29 = sphi 0, %s26
      %s30 = sphi 0, %s29
      %s46 = sphi 0, %s30
      %s50 = sphi 0, %s50
      %s52 = sphi 0, %s50
      %s53 = sphi 0, %s52
      %s67 = sphi 0, %s53
      %s71 = sphi 0, %s71
      %s73 = sphi 0, %s71
      %s74 = sphi 0, %s73
      %s88 = sphi 0, %s74
      %s92 = sphi 0, %s92
      %s94 = sphi 0, %s92
      %s95 = sphi 0, %s94
      %s109 = sphi 0, %s95
      %s115 = sphi 0, %s117
      %s118 = sphi 0, %s115
      %s119 = sphi 0, %s118
      %s135 = sphi 0, %s119
    $region4: #{tpu_custom_call.1} parent=1 // loop_header_branch
      %19 = sbr.rel (%p17) target = $region8
    $region5: #{tpu_custom_call.1} parent=1 // loop_body
      %s21 = ssub.s32 %s16, 1
      %s22 = ssub.s32 %s16, 2
      %s23 = sadd.s32 %s16, 1
      %s24 = ssub.s32 %s16, %s23
      %p25 = scmp.eq.s32.totalorder %s24, 0
      %s27 = sadd.s32 %s26, 1
      %s28 = scalar_select %p25, %s26, %s27
      %p31 = pneg %p25
      %p32 = scmp.eq.s32.totalorder %s16, 1
      %p33 = por %p31, %p32
      %p34 = scmp.ne.s32.totalorder %s26, %s29
      %p35 = scmp.eq.s32.totalorder %s16, 0
      %p36 = por %p34, %p35
      %p37 = scmp.ne.s32.totalorder %s26, %s29
      %p38 = scmp.eq.s32.totalorder %s21, 1
      %p39 = por %p37, %p38
      %p40 = scmp.ne.s32.totalorder %s29, %s30
      %p41 = scmp.eq.s32.totalorder %s21, 0
      %p42 = por %p40, %p41
      %p43 = scmp.ne.s32.totalorder %s29, %s30
      %p44 = scmp.eq.s32.totalorder %s22, 1
      %p45 = por %p43, %p44
      %p47 = scmp.ne.s32.totalorder %s30, %s46
      %p48 = scmp.eq.s32.totalorder %s22, 0
      %p49 = por %p47, %p48
      %s51 = sadd.s32 %s50, 1
      %p54 = scmp.eq.s32.totalorder %s16, 1
      %p55 = scmp.ne.s32.totalorder %s50, %s52
      %p56 = scmp.eq.s32.totalorder %s16, 0
      %p57 = por %p55, %p56
      %p58 = scmp.ne.s32.totalorder %s50, %s52
      %p59 = scmp.eq.s32.totalorder %s21, 1
      %p60 = por %p58, %p59
      %p61 = scmp.ne.s32.totalorder %s52, %s53
      %p62 = scmp.eq.s32.totalorder %s21, 0
      %p63 = por %p61, %p62
      %p64 = scmp.ne.s32.totalorder %s52, %s53
      %p65 = scmp.eq.s32.totalorder %s22, 1
      %p66 = por %p64, %p65
      %p68 = scmp.ne.s32.totalorder %s53, %s67
      %p69 = scmp.eq.s32.totalorder %s22, 0
      %p70 = por %p68, %p69
      %s72 = sadd.s32 %s71, 1
      %p75 = scmp.eq.s32.totalorder %s16, 1
      %p76 = scmp.ne.s32.totalorder %s71, %s73
      %p77 = scmp.eq.s32.totalorder %s16, 0
      %p78 = por %p76, %p77
      %p79 = scmp.ne.s32.totalorder %s71, %s73
      %p80 = scmp.eq.s32.totalorder %s21, 1
      %p81 = por %p79, %p80
      %p82 = scmp.ne.s32.totalorder %s73, %s74
      %p83 = scmp.eq.s32.totalorder %s21, 0
      %p84 = por %p82, %p83
      %p85 = scmp.ne.s32.totalorder %s73, %s74
      %p86 = scmp.eq.s32.totalorder %s22, 1
      %p87 = por %p85, %p86
      %p89 = scmp.ne.s32.totalorder %s74, %s88
      %p90 = scmp.eq.s32.totalorder %s22, 0
      %p91 = por %p89, %p90
      %s93 = sadd.s32 %s92, 1
      %p96 = scmp.eq.s32.totalorder %s16, 1
      %p97 = scmp.ne.s32.totalorder %s92, %s94
      %p98 = scmp.eq.s32.totalorder %s16, 0
      %p99 = por %p97, %p98
      %p100 = scmp.ne.s32.totalorder %s92, %s94
      %p101 = scmp.eq.s32.totalorder %s21, 1
      %p102 = por %p100, %p101
      %p103 = scmp.ne.s32.totalorder %s94, %s95
      %p104 = scmp.eq.s32.totalorder %s21, 0
      %p105 = por %p103, %p104
      %p106 = scmp.ne.s32.totalorder %s94, %s95
      %p107 = scmp.eq.s32.totalorder %s22, 1
      %p108 = por %p106, %p107
      %p110 = scmp.ne.s32.totalorder %s95, %s109
      %p111 = scmp.eq.s32.totalorder %s22, 0
      %p112 = por %p110, %p111
      %s113 = ssub.s32 %s16, %s23
      %p114 = scmp.eq.s32.totalorder %s113, 0
      %s116 = sadd.s32 %s115, 1
      %s117 = scalar_select %p114, %s115, %s116
      %p120 = pneg %p114
      %p121 = scmp.eq.s32.totalorder %s16, 1
      %p122 = por %p120, %p121
      %p123 = scmp.ne.s32.totalorder %s115, %s118
      %p124 = scmp.eq.s32.totalorder %s16, 0
      %p125 = por %p123, %p124
      %p126 = scmp.ne.s32.totalorder %s115, %s118
      %p127 = scmp.eq.s32.totalorder %s21, 1
      %p128 = por %p126, %p127
      %p129 = scmp.ne.s32.totalorder %s118, %s119
      %p130 = scmp.eq.s32.totalorder %s21, 0
      %p131 = por %p129, %p130
      %p132 = scmp.ne.s32.totalorder %s118, %s119
      %p133 = scmp.eq.s32.totalorder %s22, 1
      %p134 = por %p132, %p133
      %p136 = scmp.ne.s32.totalorder %s119, %s135
      %p137 = scmp.eq.s32.totalorder %s22, 0
      %p138 = por %p136, %p137
      %p139 = scmp.le.s32.totalorder 1, %s16
      %p140 = scmp.lt.s32.totalorder %s16, 3
      %p141 = pnand %p139, %p140
      %p142 = pneg %p141
      // Predicated region
      $region9: #{tpu_custom_call.1} parent=5 // pred_check
        _
      $region10: #{tpu_custom_call.1} parent=5 // pred_check_branch
        %144 = sbr.rel (%p141) target = $region12
      $region11: #{tpu_custom_call.1} parent=5 // pred_region
        %s145 = ssub.s32 %s16, 1
        // Predicated region
        $region13: #{tpu_custom_call.1} parent=11 // pred_check
          %p146 = pneg %p63
        $region14: #{tpu_custom_call.1} parent=11 // pred_check_branch
          %148 = sbr.rel (%p146) target = $region16
        $region15: #{tpu_custom_call.1} parent=11 // pred_region
          _
        $region16: #{tpu_custom_call.1} parent=11 // pred_fallthru
          _
        // Predicated region
        $region17: #{tpu_custom_call.1} parent=11 // pred_check
          %p149 = pneg %p84
        $region18: #{tpu_custom_call.1} parent=11 // pred_check_branch
          %151 = sbr.rel (%p149) target = $region20
        $region19: #{tpu_custom_call.1} parent=11 // pred_region
          _
        $region20: #{tpu_custom_call.1} parent=11 // pred_fallthru
          _
        // Predicated region
        $region21: #{tpu_custom_call.1} parent=11 // pred_check
          %p152 = pneg %p105
        $region22: #{tpu_custom_call.1} parent=11 // pred_check_branch
          %154 = sbr.rel (%p152) target = $region24
        $region23: #{tpu_custom_call.1} parent=11 // pred_region
          _
        $region24: #{tpu_custom_call.1} parent=11 // pred_fallthru
          _
      $region12: #{tpu_custom_call.1} parent=5 // pred_fallthru
        _
      %p155 = scmp.lt.s32.totalorder %s16, 2
      // Predicated region
      $region25: #{tpu_custom_call.1} parent=5 // pred_check
        %p156 = pneg %p155
      $region26: #{tpu_custom_call.1} parent=5 // pred_check_branch
        %158 = sbr.rel (%p156) target = $region28
      $region27: #{tpu_custom_call.1} parent=5 // pred_region
        // Predicated region
        $region29: #{tpu_custom_call.1} parent=27 // pred_check
          %p159 = pneg %p36
        $region30: #{tpu_custom_call.1} parent=27 // pred_check_branch
          %161 = sbr.rel (%p159) target = $region32
        $region31: #{tpu_custom_call.1} parent=27 // pred_region
          %s162 = sand.u32 %s26, 1
          %s163 = scalar_lea.sflag [#allocation3], %s162
          %s164 = sand.u32 %s26, 1
          %s165 = smul.addr %s164, 32
          %s166 = scalar_lea.vmem [#allocation2], %s165
          %s167 = smul.u32 8, %s16
          %169 = vsyncadd %s163, 0
          %s170 = smul.addr %s167, 4
          %s171 = scalar_lea.hbm %s0, %s170
          %s173 = sshll.u32 %s171, 4
          %s174 = int_to_ptr.hbm [resolvable:$true] %s173
          %s175 = sshll.u32 %s166, 4
          %s176 = int_to_ptr.vmem [resolvable:$true] %s175
          %178 = dma.hbm_to_vmem [thread:$0]  %s174, 512, %s176, %s163
        $region32: #{tpu_custom_call.1} parent=27 // pred_fallthru
          _
      $region28: #{tpu_custom_call.1} parent=5 // pred_fallthru
        _
      %p179 = scmp.le.s32.totalorder 1, %s16
      %p180 = scmp.lt.s32.totalorder %s16, 3
      %p181 = pnand %p179, %p180
      %p182 = pneg %p181
      // Predicated region
      $region33: #{tpu_custom_call.1} parent=5 // pred_check
        _
      $region34: #{tpu_custom_call.1} parent=5 // pred_check_branch
        %184 = sbr.rel (%p181) target = $region36
      $region35: #{tpu_custom_call.1} parent=5 // pred_region
        %s185 = ssub.s32 %s16, 1
        %s186 = sand.u32 %s29, 1
        %s187 = scalar_lea.sflag [#allocation3], %s186
        %s188 = sand.u32 %s29, 1
        %s189 = smul.addr %s188, 32
        %s190 = scalar_lea.vmem [#allocation2], %s189
        // Predicated region
        $region37: #{tpu_custom_call.1} parent=35 // pred_check
          %p191 = pneg %p42
        $region38: #{tpu_custom_call.1} parent=35 // pred_check_branch
          %193 = sbr.rel (%p191) target = $region40
        $region39: #{tpu_custom_call.1} parent=35 // pred_region
          %195 = dma.done %s187, 512
        $region40: #{tpu_custom_call.1} parent=35 // pred_fallthru
          _
        %s196 = sand.u32 %s29, 1
        %s197 = scalar_lea.sflag [#allocation3], %s196
        %s198 = sand.u32 %s29, 1
        %s199 = smul.addr %s198, 32
        %s200 = scalar_lea.vmem [#allocation2], %s199
        %p201 = pneg %p42
        %p202 = pneg %p39
        %p203 = pneg %p63
        %p204 = pneg %p60
        %p205 = pneg %p84
        %p206 = pneg %p81
        %p207 = pneg %p105
        %p208 = pneg %p102
        %p209 = pneg %p131
        %p210 = pneg %p128
        %s211 = sand.u32 %s118, 1
        %s212 = scalar_lea.sflag [#allocation4], %s211
        %s213 = sand.u32 %s118, 1
        %s214 = smul.addr %s213, 8
        %s215 = scalar_lea.vmem [#allocation5], %s214
        %s216 = smul.u32 8, %s21
        %v218 = vld [vmem:[%s3] sm:$0xff]
        %v219 = vld [vmem:[%s3 + $0x8] sm:$0xff]
        %v220 = vld [vmem:[%s3 + $0x10] sm:$0xff]
        %v221 = vld [vmem:[%s3 + $0x18] sm:$0xff]
        %v222 = vld [vmem:[%s190] sm:$0xff]
        %v223 = vld [vmem:[%s190 + $0x8] sm:$0xff]
        %v224 = vld [vmem:[%s190 + $0x10] sm:$0xff]
        %v225 = vld [vmem:[%s190 + $0x18] sm:$0xff]
        %v226 = vld [vmem:[%s1] sm:$0xf]
        %v227 = vld [vmem:[%s1 + $0x4] sm:$0xf]
        %v228 = vld [vmem:[%s1 + $0x8] sm:$0xf]
        %v229 = vld [vmem:[%s1 + $0xc] sm:$0xf]
        %231 = vset.pattern.permute.xlu0 0
        %232 = vperm.xlu0 %231, %v218
        %v233 = vpop.permute.xlu0 %232
        %236 = vset.pattern.permute.xlu0 0
        %237 = vperm.xlu0 %236, %v219
        %v238 = vpop.permute.xlu0 %237
        %241 = vset.pattern.permute.xlu0 0
        %242 = vperm.xlu0 %241, %v220
        %v243 = vpop.permute.xlu0 %242
        %246 = vset.pattern.permute.xlu0 0
        %247 = vperm.xlu0 %246, %v221
        %v248 = vpop.permute.xlu0 %247
        %v254 = vunpack.c.l.b16 %v226
        %v255 = vunpack.c.l.b16 %v227
        %v256 = vunpack.c.l.b16 %v228
        %v257 = vunpack.c.l.b16 %v229
        %v258 = vpack.c.b16 %v255, %v254
        %v259 = vpack.c.b16 %v257, %v256
        %v264 = vunpack.c.l.b16 %v222
        %v265 = vunpack.c.h.b16 %v222
        %v266 = vunpack.c.l.b16 %v223
        %v267 = vunpack.c.h.b16 %v223
        %v268 = vunpack.c.l.b16 %v224
        %v269 = vunpack.c.h.b16 %v224
        %v270 = vunpack.c.l.b16 %v225
        %v271 = vunpack.c.h.b16 %v225
        %v272 = vpack.c.b16 %v264, %v264
        %v273 = vpack.c.b16 %v265, %v265
        %v274 = vpack.c.b16 %v266, %v266
        %v275 = vpack.c.b16 %v267, %v267
        %v276 = vpack.c.b16 %v268, %v268
        %v277 = vpack.c.b16 %v269, %v269
        %v278 = vpack.c.b16 %v270, %v270
        %v279 = vpack.c.b16 %v271, %v271
        %vm280 = vcmask 64512
        %v282 = vsel %vm280, %v258, 0
        %v285 = vsel %vm280, %v259, 0
        %vm287 = vcmask 1043456
        %v289 = vsel %vm287, %v272, 0
        %v292 = vsel %vm287, %v273, 0
        %v295 = vsel %vm287, %v274, 0
        %v298 = vsel %vm287, %v275, 0
        %v301 = vsel %vm287, %v276, 0
        %v304 = vsel %vm287, %v277, 0
        %v307 = vsel %vm287, %v278, 0
        %v310 = vsel %vm287, %v279, 0
        %312 = vmatpush.bf16.msra.mxu0 0
        %313 = vmatpush.bf16.msra.mxu0 0
        %314 = vmatpush.bf16.msra.mxu0 0
        %315 = vmatpush.bf16.msra.mxu0 0
        %316 = vmatpush.bf16.msra.mxu0 0
        %317 = vmatpush.bf16.msra.mxu0 0
        %318 = vmatpush.bf16.msra.mxu0 0
        %319 = vmatpush.bf16.msra.mxu0 %v289
        %320 = vmatmul.bf16.gmra.mxu0 %v282
        %v321 = vpop.f32.mrf.mxu0
        %v322 = vadd.f32 %v233, %v321
        %v323 = vpop.f32.mrf.mxu0
        %v324 = vadd.f32 %v238, %v323
        %325 = vmatmul.bf16.gmra.mxu0 %v285
        %v326 = vpop.f32.mrf.mxu0
        %v327 = vadd.f32 %v243, %v326
        %v328 = vpop.f32.mrf.mxu0
        %v329 = vadd.f32 %v248, %v328
        %330 = vdwg.mxu0
        %331 = vmatpush.bf16.msra.mxu0 0
        %332 = vmatpush.bf16.msra.mxu0 0
        %333 = vmatpush.bf16.msra.mxu0 0
        %334 = vmatpush.bf16.msra.mxu0 0
        %335 = vmatpush.bf16.msra.mxu0 0
        %336 = vmatpush.bf16.msra.mxu0 0
        %337 = vmatpush.bf16.msra.mxu0 0
        %338 = vmatpush.bf16.msra.mxu0 %v292
        %339 = vmatmul.bf16.gmra.mxu0 %v282
        %v340 = vpop.f32.mrf.mxu0
        %v341 = vadd.f32 %v233, %v340
        %v342 = vpop.f32.mrf.mxu0
        %v343 = vadd.f32 %v238, %v342
        %344 = vmatmul.bf16.gmra.mxu0 %v285
        %v345 = vpop.f32.mrf.mxu0
        %v346 = vadd.f32 %v243, %v345
        %v347 = vpop.f32.mrf.mxu0
        %v348 = vadd.f32 %v248, %v347
        %349 = vdwg.mxu0
        %350 = vmatpush.bf16.msra.mxu0 0
        %351 = vmatpush.bf16.msra.mxu0 0
        %352 = vmatpush.bf16.msra.mxu0 0
        %353 = vmatpush.bf16.msra.mxu0 0
        %354 = vmatpush.bf16.msra.mxu0 0
        %355 = vmatpush.bf16.msra.mxu0 0
        %356 = vmatpush.bf16.msra.mxu0 0
        %357 = vmatpush.bf16.msra.mxu0 %v295
        %358 = vmatmul.bf16.gmra.mxu0 %v282
        %v359 = vpop.f32.mrf.mxu0
        %v360 = vadd.f32 %v233, %v359
        %v361 = vpop.f32.mrf.mxu0
        %v362 = vadd.f32 %v238, %v361
        %363 = vmatmul.bf16.gmra.mxu0 %v285
        %v364 = vpop.f32.mrf.mxu0
        %v365 = vadd.f32 %v243, %v364
        %v366 = vpop.f32.mrf.mxu0
        %v367 = vadd.f32 %v248, %v366
        %368 = vdwg.mxu0
        %369 = vmatpush.bf16.msra.mxu0 0
        %370 = vmatpush.bf16.msra.mxu0 0
        %371 = vmatpush.bf16.msra.mxu0 0
        %372 = vmatpush.bf16.msra.mxu0 0
        %373 = vmatpush.bf16.msra.mxu0 0
        %374 = vmatpush.bf16.msra.mxu0 0
        %375 = vmatpush.bf16.msra.mxu0 0
        %376 = vmatpush.bf16.msra.mxu0 %v298
        %377 = vmatmul.bf16.gmra.mxu0 %v282
        %v378 = vpop.f32.mrf.mxu0
        %v379 = vadd.f32 %v233, %v378
        %v380 = vpop.f32.mrf.mxu0
        %v381 = vadd.f32 %v238, %v380
        %382 = vmatmul.bf16.gmra.mxu0 %v285
        %v383 = vpop.f32.mrf.mxu0
        %v384 = vadd.f32 %v243, %v383
        %v385 = vpop.f32.mrf.mxu0
        %v386 = vadd.f32 %v248, %v385
        %387 = vdwg.mxu0
        %388 = vmatpush.bf16.msra.mxu0 0
        %389 = vmatpush.bf16.msra.mxu0 0
        %390 = vmatpush.bf16.msra.mxu0 0
        %391 = vmatpush.bf16.msra.mxu0 0
        %392 = vmatpush.bf16.msra.mxu0 0
        %393 = vmatpush.bf16.msra.mxu0 0
        %394 = vmatpush.bf16.msra.mxu0 0
        %395 = vmatpush.bf16.msra.mxu0 %v301
        %396 = vmatmul.bf16.gmra.mxu0 %v282
        %v397 = vpop.f32.mrf.mxu0
        %v398 = vadd.f32 %v233, %v397
        %v399 = vpop.f32.mrf.mxu0
        %v400 = vadd.f32 %v238, %v399
        %401 = vmatmul.bf16.gmra.mxu0 %v285
        %v402 = vpop.f32.mrf.mxu0
        %v403 = vadd.f32 %v243, %v402
        %v404 = vpop.f32.mrf.mxu0
        %v405 = vadd.f32 %v248, %v404
        %406 = vdwg.mxu0
        %407 = vmatpush.bf16.msra.mxu0 0
        %408 = vmatpush.bf16.msra.mxu0 0
        %409 = vmatpush.bf16.msra.mxu0 0
        %410 = vmatpush.bf16.msra.mxu0 0
        %411 = vmatpush.bf16.msra.mxu0 0
        %412 = vmatpush.bf16.msra.mxu0 0
        %413 = vmatpush.bf16.msra.mxu0 0
        %414 = vmatpush.bf16.msra.mxu0 %v304
        %415 = vmatmul.bf16.gmra.mxu0 %v282
        %v416 = vpop.f32.mrf.mxu0
        %v417 = vadd.f32 %v233, %v416
        %v418 = vpop.f32.mrf.mxu0
        %v419 = vadd.f32 %v238, %v418
        %420 = vmatmul.bf16.gmra.mxu0 %v285
        %v421 = vpop.f32.mrf.mxu0
        %v422 = vadd.f32 %v243, %v421
        %v423 = vpop.f32.mrf.mxu0
        %v424 = vadd.f32 %v248, %v423
        %425 = vdwg.mxu0
        %426 = vmatpush.bf16.msra.mxu0 0
        %427 = vmatpush.bf16.msra.mxu0 0
        %428 = vmatpush.bf16.msra.mxu0 0
        %429 = vmatpush.bf16.msra.mxu0 0
        %430 = vmatpush.bf16.msra.mxu0 0
        %431 = vmatpush.bf16.msra.mxu0 0
        %432 = vmatpush.bf16.msra.mxu0 0
        %433 = vmatpush.bf16.msra.mxu0 %v307
        %434 = vmatmul.bf16.gmra.mxu0 %v282
        %v435 = vpop.f32.mrf.mxu0
        %v436 = vadd.f32 %v233, %v435
        %v437 = vpop.f32.mrf.mxu0
        %v438 = vadd.f32 %v238, %v437
        %439 = vmatmul.bf16.gmra.mxu0 %v285
        %v440 = vpop.f32.mrf.mxu0
        %v441 = vadd.f32 %v243, %v440
        %v442 = vpop.f32.mrf.mxu0
        %v443 = vadd.f32 %v248, %v442
        %444 = vdwg.mxu0
        %445 = vmatpush.bf16.msra.mxu0 0
        %446 = vmatpush.bf16.msra.mxu0 0
        %447 = vmatpush.bf16.msra.mxu0 0
        %448 = vmatpush.bf16.msra.mxu0 0
        %449 = vmatpush.bf16.msra.mxu0 0
        %450 = vmatpush.bf16.msra.mxu0 0
        %451 = vmatpush.bf16.msra.mxu0 0
        %452 = vmatpush.bf16.msra.mxu0 %v310
        %453 = vmatmul.bf16.gmra.mxu0 %v282
        %v454 = vpop.f32.mrf.mxu0
        %v455 = vadd.f32 %v233, %v454
        %v456 = vpop.f32.mrf.mxu0
        %v457 = vadd.f32 %v238, %v456
        %458 = vmatmul.bf16.gmra.mxu0 %v285
        %v459 = vpop.f32.mrf.mxu0
        %v460 = vadd.f32 %v243, %v459
        %v461 = vpop.f32.mrf.mxu0
        %v462 = vadd.f32 %v248, %v461
        %463 = vdwg.mxu0
        %v464 = vadd.f32 %v322, %v324
        %v465 = vadd.f32 %v464, %v327
        %v466 = vadd.f32 %v465, %v329
        %v467 = vrot.slane %v466, 4
        %v468 = vadd.f32 %v466, %v467
        %v469 = vrot.slane %v468, 2
        %v470 = vadd.f32 %v468, %v469
        %v471 = vrot.slane %v470, 1
        %v472 = vadd.f32 %v470, %v471
        %v473 = vadd.f32 %v341, %v343
        %v474 = vadd.f32 %v473, %v346
        %v475 = vadd.f32 %v474, %v348
        %v476 = vrot.slane %v475, 4
        %v477 = vadd.f32 %v475, %v476
        %v478 = vrot.slane %v477, 2
        %v479 = vadd.f32 %v477, %v478
        %v480 = vrot.slane %v479, 1
        %v481 = vadd.f32 %v479, %v480
        %v482 = vadd.f32 %v360, %v362
        %v483 = vadd.f32 %v482, %v365
        %v484 = vadd.f32 %v483, %v367
        %v485 = vrot.slane %v484, 4
        %v486 = vadd.f32 %v484, %v485
        %v487 = vrot.slane %v486, 2
        %v488 = vadd.f32 %v486, %v487
        %v489 = vrot.slane %v488, 1
        %v490 = vadd.f32 %v488, %v489
        %v491 = vadd.f32 %v379, %v381
        %v492 = vadd.f32 %v491, %v384
        %v493 = vadd.f32 %v492, %v386
        %v494 = vrot.slane %v493, 4
        %v495 = vadd.f32 %v493, %v494
        %v496 = vrot.slane %v495, 2
        %v497 = vadd.f32 %v495, %v496
        %v498 = vrot.slane %v497, 1
        %v499 = vadd.f32 %v497, %v498
        %v500 = vadd.f32 %v398, %v400
        %v501 = vadd.f32 %v500, %v403
        %v502 = vadd.f32 %v501, %v405
        %v503 = vrot.slane %v502, 4
        %v504 = vadd.f32 %v502, %v503
        %v505 = vrot.slane %v504, 2
        %v506 = vadd.f32 %v504, %v505
        %v507 = vrot.slane %v506, 1
        %v508 = vadd.f32 %v506, %v507
        %v509 = vadd.f32 %v417, %v419
        %v510 = vadd.f32 %v509, %v422
        %v511 = vadd.f32 %v510, %v424
        %v512 = vrot.slane %v511, 4
        %v513 = vadd.f32 %v511, %v512
        %v514 = vrot.slane %v513, 2
        %v515 = vadd.f32 %v513, %v514
        %v516 = vrot.slane %v515, 1
        %v517 = vadd.f32 %v515, %v516
        %v518 = vadd.f32 %v436, %v438
        %v519 = vadd.f32 %v518, %v441
        %v520 = vadd.f32 %v519, %v443
        %v521 = vrot.slane %v520, 4
        %v522 = vadd.f32 %v520, %v521
        %v523 = vrot.slane %v522, 2
        %v524 = vadd.f32 %v522, %v523
        %v525 = vrot.slane %v524, 1
        %v526 = vadd.f32 %v524, %v525
        %v527 = vadd.f32 %v455, %v457
        %v528 = vadd.f32 %v527, %v460
        %v529 = vadd.f32 %v528, %v462
        %v530 = vrot.slane %v529, 4
        %v531 = vadd.f32 %v529, %v530
        %v532 = vrot.slane %v531, 2
        %v533 = vadd.f32 %v531, %v532
        %v534 = vrot.slane %v533, 1
        %v535 = vadd.f32 %v533, %v534
        %v536 = vrcp.pop 32.0
        %v537 = vmul.f32 32.0, %v536
        %v538 = vsub.f32 1.0, %v537
        %v539 = vmul.f32 %v536, %v538
        %v540 = vadd.f32 %v536, %v539
        %vm541 = vweird.f32 %v536
        %v542 = vsel %vm541, %v536, %v540
        %v543 = vmul.f32 %v472, %v542
        %v544 = vmul.f32 %v481, %v542
        %v545 = vmul.f32 %v490, %v542
        %v546 = vmul.f32 %v499, %v542
        %v547 = vmul.f32 %v508, %v542
        %v548 = vmul.f32 %v517, %v542
        %v549 = vmul.f32 %v526, %v542
        %v550 = vmul.f32 %v535, %v542
        %v551 = vmul.f32 %v322, %v322
        %v552 = vmul.f32 %v341, %v341
        %v553 = vmul.f32 %v360, %v360
        %v554 = vmul.f32 %v379, %v379
        %v555 = vmul.f32 %v398, %v398
        %v556 = vmul.f32 %v417, %v417
        %v557 = vmul.f32 %v436, %v436
        %v558 = vmul.f32 %v455, %v455
        %v559 = vmul.f32 %v324, %v324
        %v560 = vmul.f32 %v343, %v343
        %v561 = vmul.f32 %v362, %v362
        %v562 = vmul.f32 %v381, %v381
        %v563 = vmul.f32 %v400, %v400
        %v564 = vmul.f32 %v419, %v419
        %v565 = vmul.f32 %v438, %v438
        %v566 = vmul.f32 %v457, %v457
        %v567 = vmul.f32 %v327, %v327
        %v568 = vmul.f32 %v346, %v346
        %v569 = vmul.f32 %v365, %v365
        %v570 = vmul.f32 %v384, %v384
        %v571 = vmul.f32 %v403, %v403
        %v572 = vmul.f32 %v422, %v422
        %v573 = vmul.f32 %v441, %v441
        %v574 = vmul.f32 %v460, %v460
        %v575 = vmul.f32 %v329, %v329
        %v576 = vmul.f32 %v348, %v348
        %v577 = vmul.f32 %v367, %v367
        %v578 = vmul.f32 %v386, %v386
        %v579 = vmul.f32 %v405, %v405
        %v580 = vmul.f32 %v424, %v424
        %v581 = vmul.f32 %v443, %v443
        %v582 = vmul.f32 %v462, %v462
        %v583 = vadd.f32 %v551, %v559
        %v584 = vadd.f32 %v583, %v567
        %v585 = vadd.f32 %v584, %v575
        %v586 = vrot.slane %v585, 4
        %v587 = vadd.f32 %v585, %v586
        %v588 = vrot.slane %v587, 2
        %v589 = vadd.f32 %v587, %v588
        %v590 = vrot.slane %v589, 1
        %v591 = vadd.f32 %v589, %v590
        %v592 = vadd.f32 %v552, %v560
        %v593 = vadd.f32 %v592, %v568
        %v594 = vadd.f32 %v593, %v576
        %v595 = vrot.slane %v594, 4
        %v596 = vadd.f32 %v594, %v595
        %v597 = vrot.slane %v596, 2
        %v598 = vadd.f32 %v596, %v597
        %v599 = vrot.slane %v598, 1
        %v600 = vadd.f32 %v598, %v599
        %v601 = vadd.f32 %v553, %v561
        %v602 = vadd.f32 %v601, %v569
        %v603 = vadd.f32 %v602, %v577
        %v604 = vrot.slane %v603, 4
        %v605 = vadd.f32 %v603, %v604
        %v606 = vrot.slane %v605, 2
        %v607 = vadd.f32 %v605, %v606
        %v608 = vrot.slane %v607, 1
        %v609 = vadd.f32 %v607, %v608
        %v610 = vadd.f32 %v554, %v562
        %v611 = vadd.f32 %v610, %v570
        %v612 = vadd.f32 %v611, %v578
        %v613 = vrot.slane %v612, 4
        %v614 = vadd.f32 %v612, %v613
        %v615 = vrot.slane %v614, 2
        %v616 = vadd.f32 %v614, %v615
        %v617 = vrot.slane %v616, 1
        %v618 = vadd.f32 %v616, %v617
        %v619 = vadd.f32 %v555, %v563
        %v620 = vadd.f32 %v619, %v571
        %v621 = vadd.f32 %v620, %v579
        %v622 = vrot.slane %v621, 4
        %v623 = vadd.f32 %v621, %v622
        %v624 = vrot.slane %v623, 2
        %v625 = vadd.f32 %v623, %v624
        %v626 = vrot.slane %v625, 1
        %v627 = vadd.f32 %v625, %v626
        %v628 = vadd.f32 %v556, %v564
        %v629 = vadd.f32 %v628, %v572
        %v630 = vadd.f32 %v629, %v580
        %v631 = vrot.slane %v630, 4
        %v632 = vadd.f32 %v630, %v631
        %v633 = vrot.slane %v632, 2
        %v634 = vadd.f32 %v632, %v633
        %v635 = vrot.slane %v634, 1
        %v636 = vadd.f32 %v634, %v635
        %v637 = vadd.f32 %v557, %v565
        %v638 = vadd.f32 %v637, %v573
        %v639 = vadd.f32 %v638, %v581
        %v640 = vrot.slane %v639, 4
        %v641 = vadd.f32 %v639, %v640
        %v642 = vrot.slane %v641, 2
        %v643 = vadd.f32 %v641, %v642
        %v644 = vrot.slane %v643, 1
        %v645 = vadd.f32 %v643, %v644
        %v646 = vadd.f32 %v558, %v566
        %v647 = vadd.f32 %v646, %v574
        %v648 = vadd.f32 %v647, %v582
        %v649 = vrot.slane %v648, 4
        %v650 = vadd.f32 %v648, %v649
        %v651 = vrot.slane %v650, 2
        %v652 = vadd.f32 %v650, %v651
        %v653 = vrot.slane %v652, 1
        %v654 = vadd.f32 %v652, %v653
        %v655 = vmul.f32 %v591, %v542
        %v656 = vmul.f32 %v600, %v542
        %v657 = vmul.f32 %v609, %v542
        %v658 = vmul.f32 %v618, %v542
        %v659 = vmul.f32 %v627, %v542
        %v660 = vmul.f32 %v636, %v542
        %v661 = vmul.f32 %v645, %v542
        %v662 = vmul.f32 %v654, %v542
        %v663 = vmul.f32 %v543, %v543
        %v664 = vmul.f32 %v544, %v544
        %v665 = vmul.f32 %v545, %v545
        %v666 = vmul.f32 %v546, %v546
        %v667 = vmul.f32 %v547, %v547
        %v668 = vmul.f32 %v548, %v548
        %v669 = vmul.f32 %v549, %v549
        %v670 = vmul.f32 %v550, %v550
        %v671 = vsub.f32 %v655, %v663
        %v672 = vsub.f32 %v656, %v664
        %v673 = vsub.f32 %v657, %v665
        %v674 = vsub.f32 %v658, %v666
        %v675 = vsub.f32 %v659, %v667
        %v676 = vsub.f32 %v660, %v668
        %v677 = vsub.f32 %v661, %v669
        %v678 = vsub.f32 %v662, %v670
        %v679 = vmax.f32 %v671, 0.0
        %v680 = vmax.f32 %v672, 0.0
        %v681 = vmax.f32 %v673, 0.0
        %v682 = vmax.f32 %v674, 0.0
        %v683 = vmax.f32 %v675, 0.0
        %v684 = vmax.f32 %v676, 0.0
        %v685 = vmax.f32 %v677, 0.0
        %v686 = vmax.f32 %v678, 0.0
        %v687 = vadd.f32 %v679, 1e-05
        %v688 = vadd.f32 %v680, 1e-05
        %v689 = vadd.f32 %v681, 1e-05
        %v690 = vadd.f32 %v682, 1e-05
        %v691 = vadd.f32 %v683, 1e-05
        %v692 = vadd.f32 %v684, 1e-05
        %v693 = vadd.f32 %v685, 1e-05
        %v694 = vadd.f32 %v686, 1e-05
        %v695 = vrsqrt.pop %v687
        %v696 = vmul.f32 %v695, %v687
        %v697 = vmul.f32 %v696, %v695
        %v698 = vmul.f32 0.5, %v697
        %v699 = vsub.f32 1.5, %v698
        %v700 = vmul.f32 %v695, %v699
        %vm701 = vweird.f32 %v687
        %vm702 = vweird.f32 %v695
        %vm703 = vmor %vm701, %vm702
        %v704 = vsel %vm703, %v695, %v700
        %v705 = vrsqrt.pop %v688
        %v706 = vmul.f32 %v705, %v688
        %v707 = vmul.f32 %v706, %v705
        %v708 = vmul.f32 0.5, %v707
        %v709 = vsub.f32 1.5, %v708
        %v710 = vmul.f32 %v705, %v709
        %vm711 = vweird.f32 %v688
        %vm712 = vweird.f32 %v705
        %vm713 = vmor %vm711, %vm712
        %v714 = vsel %vm713, %v705, %v710
        %v715 = vrsqrt.pop %v689
        %v716 = vmul.f32 %v715, %v689
        %v717 = vmul.f32 %v716, %v715
        %v718 = vmul.f32 0.5, %v717
        %v719 = vsub.f32 1.5, %v718
        %v720 = vmul.f32 %v715, %v719
        %vm721 = vweird.f32 %v689
        %vm722 = vweird.f32 %v715
        %vm723 = vmor %vm721, %vm722
        %v724 = vsel %vm723, %v715, %v720
        %v725 = vrsqrt.pop %v690
        %v726 = vmul.f32 %v725, %v690
        %v727 = vmul.f32 %v726, %v725
        %v728 = vmul.f32 0.5, %v727
        %v729 = vsub.f32 1.5, %v728
        %v730 = vmul.f32 %v725, %v729
        %vm731 = vweird.f32 %v690
        %vm732 = vweird.f32 %v725
        %vm733 = vmor %vm731, %vm732
        %v734 = vsel %vm733, %v725, %v730
        %v735 = vrsqrt.pop %v691
        %v736 = vmul.f32 %v735, %v691
        %v737 = vmul.f32 %v736, %v735
        %v738 = vmul.f32 0.5, %v737
        %v739 = vsub.f32 1.5, %v738
        %v740 = vmul.f32 %v735, %v739
        %vm741 = vweird.f32 %v691
        %vm742 = vweird.f32 %v735
        %vm743 = vmor %vm741, %vm742
        %v744 = vsel %vm743, %v735, %v740
        %v745 = vrsqrt.pop %v692
        %v746 = vmul.f32 %v745, %v692
        %v747 = vmul.f32 %v746, %v745
        %v748 = vmul.f32 0.5, %v747
        %v749 = vsub.f32 1.5, %v748
        %v750 = vmul.f32 %v745, %v749
        %vm751 = vweird.f32 %v692
        %vm752 = vweird.f32 %v745
        %vm753 = vmor %vm751, %vm752
        %v754 = vsel %vm753, %v745, %v750
        %v755 = vrsqrt.pop %v693
        %v756 = vmul.f32 %v755, %v693
        %v757 = vmul.f32 %v756, %v755
        %v758 = vmul.f32 0.5, %v757
        %v759 = vsub.f32 1.5, %v758
        %v760 = vmul.f32 %v755, %v759
        %vm761 = vweird.f32 %v693
        %vm762 = vweird.f32 %v755
        %vm763 = vmor %vm761, %vm762
        %v764 = vsel %vm763, %v755, %v760
        %v765 = vrsqrt.pop %v694
        %v766 = vmul.f32 %v765, %v694
        %v767 = vmul.f32 %v766, %v765
        %v768 = vmul.f32 0.5, %v767
        %v769 = vsub.f32 1.5, %v768
        %v770 = vmul.f32 %v765, %v769
        %vm771 = vweird.f32 %v694
        %vm772 = vweird.f32 %v765
        %vm773 = vmor %vm771, %vm772
        %v774 = vsel %vm773, %v765, %v770
        %v775 = vsub.f32 %v322, %v543
        %v776 = vsub.f32 %v341, %v544
        %v777 = vsub.f32 %v360, %v545
        %v778 = vsub.f32 %v379, %v546
        %v779 = vsub.f32 %v398, %v547
        %v780 = vsub.f32 %v417, %v548
        %v781 = vsub.f32 %v436, %v549
        %v782 = vsub.f32 %v455, %v550
        %v783 = vsub.f32 %v324, %v543
        %v784 = vsub.f32 %v343, %v544
        %v785 = vsub.f32 %v362, %v545
        %v786 = vsub.f32 %v381, %v546
        %v787 = vsub.f32 %v400, %v547
        %v788 = vsub.f32 %v419, %v548
        %v789 = vsub.f32 %v438, %v549
        %v790 = vsub.f32 %v457, %v550
        %v791 = vsub.f32 %v327, %v543
        %v792 = vsub.f32 %v346, %v544
        %v793 = vsub.f32 %v365, %v545
        %v794 = vsub.f32 %v384, %v546
        %v795 = vsub.f32 %v403, %v547
        %v796 = vsub.f32 %v422, %v548
        %v797 = vsub.f32 %v441, %v549
        %v798 = vsub.f32 %v460, %v550
        %v799 = vsub.f32 %v329, %v543
        %v800 = vsub.f32 %v348, %v544
        %v801 = vsub.f32 %v367, %v545
        %v802 = vsub.f32 %v386, %v546
        %v803 = vsub.f32 %v405, %v547
        %v804 = vsub.f32 %v424, %v548
        %v805 = vsub.f32 %v443, %v549
        %v806 = vsub.f32 %v462, %v550
        %v807 = vmul.f32 %v775, %v704
        %v808 = vmul.f32 %v776, %v714
        %v809 = vmul.f32 %v777, %v724
        %v810 = vmul.f32 %v778, %v734
        %v811 = vmul.f32 %v779, %v744
        %v812 = vmul.f32 %v780, %v754
        %v813 = vmul.f32 %v781, %v764
        %v814 = vmul.f32 %v782, %v774
        %v815 = vmul.f32 %v783, %v704
        %v816 = vmul.f32 %v784, %v714
        %v817 = vmul.f32 %v785, %v724
        %v818 = vmul.f32 %v786, %v734
        %v819 = vmul.f32 %v787, %v744
        %v820 = vmul.f32 %v788, %v754
        %v821 = vmul.f32 %v789, %v764
        %v822 = vmul.f32 %v790, %v774
        %v823 = vmul.f32 %v791, %v704
        %v824 = vmul.f32 %v792, %v714
        %v825 = vmul.f32 %v793, %v724
        %v826 = vmul.f32 %v794, %v734
        %v827 = vmul.f32 %v795, %v744
        %v828 = vmul.f32 %v796, %v754
        %v829 = vmul.f32 %v797, %v764
        %v830 = vmul.f32 %v798, %v774
        %v831 = vmul.f32 %v799, %v704
        %v832 = vmul.f32 %v800, %v714
        %v833 = vmul.f32 %v801, %v724
        %v834 = vmul.f32 %v802, %v734
        %v835 = vmul.f32 %v803, %v744
        %v836 = vmul.f32 %v804, %v754
        %v837 = vmul.f32 %v805, %v764
        %v838 = vmul.f32 %v806, %v774
        %839 = vset.pattern.permute.xlu0 1
        %840 = vperm.xlu0 %839, %v218
        %v841 = vpop.permute.xlu0 %840
        %843 = vset.pattern.permute.xlu0 1
        %844 = vperm.xlu0 %843, %v219
        %v845 = vpop.permute.xlu0 %844
        %847 = vset.pattern.permute.xlu0 1
        %848 = vperm.xlu0 %847, %v220
        %v849 = vpop.permute.xlu0 %848
        %851 = vset.pattern.permute.xlu0 1
        %852 = vperm.xlu0 %851, %v221
        %v853 = vpop.permute.xlu0 %852
        %v855 = vmul.f32 %v807, %v841
        %v856 = vmul.f32 %v808, %v841
        %v857 = vmul.f32 %v809, %v841
        %v858 = vmul.f32 %v810, %v841
        %v859 = vmul.f32 %v811, %v841
        %v860 = vmul.f32 %v812, %v841
        %v861 = vmul.f32 %v813, %v841
        %v862 = vmul.f32 %v814, %v841
        %v863 = vmul.f32 %v815, %v845
        %v864 = vmul.f32 %v816, %v845
        %v865 = vmul.f32 %v817, %v845
        %v866 = vmul.f32 %v818, %v845
        %v867 = vmul.f32 %v819, %v845
        %v868 = vmul.f32 %v820, %v845
        %v869 = vmul.f32 %v821, %v845
        %v870 = vmul.f32 %v822, %v845
        %v871 = vmul.f32 %v823, %v849
        %v872 = vmul.f32 %v824, %v849
        %v873 = vmul.f32 %v825, %v849
        %v874 = vmul.f32 %v826, %v849
        %v875 = vmul.f32 %v827, %v849
        %v876 = vmul.f32 %v828, %v849
        %v877 = vmul.f32 %v829, %v849
        %v878 = vmul.f32 %v830, %v849
        %v879 = vmul.f32 %v831, %v853
        %v880 = vmul.f32 %v832, %v853
        %v881 = vmul.f32 %v833, %v853
        %v882 = vmul.f32 %v834, %v853
        %v883 = vmul.f32 %v835, %v853
        %v884 = vmul.f32 %v836, %v853
        %v885 = vmul.f32 %v837, %v853
        %v886 = vmul.f32 %v838, %v853
        %887 = vset.pattern.permute.xlu0 2
        %888 = vperm.xlu0 %887, %v218
        %v889 = vpop.permute.xlu0 %888
        %891 = vset.pattern.permute.xlu0 2
        %892 = vperm.xlu0 %891, %v219
        %v893 = vpop.permute.xlu0 %892
        %895 = vset.pattern.permute.xlu0 2
        %896 = vperm.xlu0 %895, %v220
        %v897 = vpop.permute.xlu0 %896
        %899 = vset.pattern.permute.xlu0 2
        %900 = vperm.xlu0 %899, %v221
        %v901 = vpop.permute.xlu0 %900
        %v903 = vadd.f32 %v855, %v889
        %v904 = vadd.f32 %v856, %v889
        %v905 = vadd.f32 %v857, %v889
        %v906 = vadd.f32 %v858, %v889
        %v907 = vadd.f32 %v859, %v889
        %v908 = vadd.f32 %v860, %v889
        %v909 = vadd.f32 %v861, %v889
        %v910 = vadd.f32 %v862, %v889
        %v911 = vadd.f32 %v863, %v893
        %v912 = vadd.f32 %v864, %v893
        %v913 = vadd.f32 %v865, %v893
        %v914 = vadd.f32 %v866, %v893
        %v915 = vadd.f32 %v867, %v893
        %v916 = vadd.f32 %v868, %v893
        %v917 = vadd.f32 %v869, %v893
        %v918 = vadd.f32 %v870, %v893
        %v919 = vadd.f32 %v871, %v897
        %v920 = vadd.f32 %v872, %v897
        %v921 = vadd.f32 %v873, %v897
        %v922 = vadd.f32 %v874, %v897
        %v923 = vadd.f32 %v875, %v897
        %v924 = vadd.f32 %v876, %v897
        %v925 = vadd.f32 %v877, %v897
        %v926 = vadd.f32 %v878, %v897
        %v927 = vadd.f32 %v879, %v901
        %v928 = vadd.f32 %v880, %v901
        %v929 = vadd.f32 %v881, %v901
        %v930 = vadd.f32 %v882, %v901
        %v931 = vadd.f32 %v883, %v901
        %v932 = vadd.f32 %v884, %v901
        %v933 = vadd.f32 %v885, %v901
        %v934 = vadd.f32 %v886, %v901
        %v935 = vtanh.pop %v903
        %v936 = vtanh.pop %v904
        %v937 = vtanh.pop %v905
        %v938 = vtanh.pop %v906
        %v939 = vtanh.pop %v907
        %v940 = vtanh.pop %v908
        %v941 = vtanh.pop %v909
        %v942 = vtanh.pop %v910
        %v943 = vtanh.pop %v911
        %v944 = vtanh.pop %v912
        %v945 = vtanh.pop %v913
        %v946 = vtanh.pop %v914
        %v947 = vtanh.pop %v915
        %v948 = vtanh.pop %v916
        %v949 = vtanh.pop %v917
        %v950 = vtanh.pop %v918
        %v951 = vtanh.pop %v919
        %v952 = vtanh.pop %v920
        %v953 = vtanh.pop %v921
        %v954 = vtanh.pop %v922
        %v955 = vtanh.pop %v923
        %v956 = vtanh.pop %v924
        %v957 = vtanh.pop %v925
        %v958 = vtanh.pop %v926
        %v959 = vtanh.pop %v927
        %v960 = vtanh.pop %v928
        %v961 = vtanh.pop %v929
        %v962 = vtanh.pop %v930
        %v963 = vtanh.pop %v931
        %v964 = vtanh.pop %v932
        %v965 = vtanh.pop %v933
        %v966 = vtanh.pop %v934
        %v967 = vld [vmem:[%s2] sm:$0xf]
        %v968 = vld [vmem:[%s2 + $0x4] sm:$0xf]
        %v969 = vld [vmem:[%s2 + $0x8] sm:$0xf]
        %v970 = vld [vmem:[%s2 + $0xc] sm:$0xf]
        %v971 = vpack.c.bf16 %v943, %v935
        %v972 = vpack.c.bf16 %v944, %v936
        %v973 = vpack.c.bf16 %v945, %v937
        %v974 = vpack.c.bf16 %v946, %v938
        %v975 = vpack.c.bf16 %v947, %v939
        %v976 = vpack.c.bf16 %v948, %v940
        %v977 = vpack.c.bf16 %v949, %v941
        %v978 = vpack.c.bf16 %v950, %v942
        %v979 = vpack.c.bf16 %v959, %v951
        %v980 = vpack.c.bf16 %v960, %v952
        %v981 = vpack.c.bf16 %v961, %v953
        %v982 = vpack.c.bf16 %v962, %v954
        %v983 = vpack.c.bf16 %v963, %v955
        %v984 = vpack.c.bf16 %v964, %v956
        %v985 = vpack.c.bf16 %v965, %v957
        %v986 = vpack.c.bf16 %v966, %v958
        %987 = vset.pattern.permute.xlu0 3
        %988 = vperm.xlu0 %987, %v218
        %v989 = vpop.permute.xlu0 %988
        %991 = vset.pattern.permute.xlu0 3
        %992 = vperm.xlu0 %991, %v219
        %v993 = vpop.permute.xlu0 %992
        %995 = vset.pattern.permute.xlu0 3
        %996 = vperm.xlu0 %995, %v220
        %v997 = vpop.permute.xlu0 %996
        %999 = vset.pattern.permute.xlu0 3
        %1000 = vperm.xlu0 %999, %v221
        %v1001 = vpop.permute.xlu0 %1000
        %v1007 = vunpack.c.l.b16 %v967
        %v1008 = vunpack.c.l.b16 %v968
        %v1009 = vunpack.c.l.b16 %v969
        %v1010 = vunpack.c.l.b16 %v970
        %v1011 = vpack.c.b16 %v1008, %v1007
        %v1012 = vpack.c.b16 %v1010, %v1009
        %vm1013 = vcmask 261120
        %v1015 = vsel %vm1013, %v1011, 0
        %v1018 = vsel %vm1013, %v1012, 0
        %1020 = vmatpush.bf16.msra.mxu0 0
        %1021 = vmatpush.bf16.msra.mxu0 0
        %1022 = vmatpush.bf16.msra.mxu0 0
        %1023 = vmatpush.bf16.msra.mxu0 0
        %1024 = vmatpush.bf16.msra.mxu0 0
        %1025 = vmatpush.bf16.msra.mxu0 0
        %1026 = vmatpush.bf16.msra.mxu0 %v979
        %1027 = vmatpush.bf16.msra.mxu0 %v971
        %1028 = vmatmul.bf16.gmra.mxu0 %v1015
        %v1029 = vpop.f32.mrf.mxu0
        %v1030 = vadd.f32 %v989, %v1029
        %v1031 = vpop.f32.mrf.mxu0
        %v1032 = vadd.f32 %v993, %v1031
        %1033 = vmatmul.bf16.gmra.mxu0 %v1018
        %v1034 = vpop.f32.mrf.mxu0
        %v1035 = vadd.f32 %v997, %v1034
        %v1036 = vpop.f32.mrf.mxu0
        %v1037 = vadd.f32 %v1001, %v1036
        %1038 = vdwg.mxu0
        %1039 = vmatpush.bf16.msra.mxu0 0
        %1040 = vmatpush.bf16.msra.mxu0 0
        %1041 = vmatpush.bf16.msra.mxu0 0
        %1042 = vmatpush.bf16.msra.mxu0 0
        %1043 = vmatpush.bf16.msra.mxu0 0
        %1044 = vmatpush.bf16.msra.mxu0 0
        %1045 = vmatpush.bf16.msra.mxu0 %v980
        %1046 = vmatpush.bf16.msra.mxu0 %v972
        %1047 = vmatmul.bf16.gmra.mxu0 %v1015
        %v1048 = vpop.f32.mrf.mxu0
        %v1049 = vadd.f32 %v989, %v1048
        %v1050 = vpop.f32.mrf.mxu0
        %v1051 = vadd.f32 %v993, %v1050
        %1052 = vmatmul.bf16.gmra.mxu0 %v1018
        %v1053 = vpop.f32.mrf.mxu0
        %v1054 = vadd.f32 %v997, %v1053
        %v1055 = vpop.f32.mrf.mxu0
        %v1056 = vadd.f32 %v1001, %v1055
        %1057 = vdwg.mxu0
        %1058 = vmatpush.bf16.msra.mxu0 0
        %1059 = vmatpush.bf16.msra.mxu0 0
        %1060 = vmatpush.bf16.msra.mxu0 0
        %1061 = vmatpush.bf16.msra.mxu0 0
        %1062 = vmatpush.bf16.msra.mxu0 0
        %1063 = vmatpush.bf16.msra.mxu0 0
        %1064 = vmatpush.bf16.msra.mxu0 %v981
        %1065 = vmatpush.bf16.msra.mxu0 %v973
        %1066 = vmatmul.bf16.gmra.mxu0 %v1015
        %v1067 = vpop.f32.mrf.mxu0
        %v1068 = vadd.f32 %v989, %v1067
        %v1069 = vpop.f32.mrf.mxu0
        %v1070 = vadd.f32 %v993, %v1069
        %1071 = vmatmul.bf16.gmra.mxu0 %v1018
        %v1072 = vpop.f32.mrf.mxu0
        %v1073 = vadd.f32 %v997, %v1072
        %v1074 = vpop.f32.mrf.mxu0
        %v1075 = vadd.f32 %v1001, %v1074
        %1076 = vdwg.mxu0
        %1077 = vmatpush.bf16.msra.mxu0 0
        %1078 = vmatpush.bf16.msra.mxu0 0
        %1079 = vmatpush.bf16.msra.mxu0 0
        %1080 = vmatpush.bf16.msra.mxu0 0
        %1081 = vmatpush.bf16.msra.mxu0 0
        %1082 = vmatpush.bf16.msra.mxu0 0
        %1083 = vmatpush.bf16.msra.mxu0 %v982
        %1084 = vmatpush.bf16.msra.mxu0 %v974
        %1085 = vmatmul.bf16.gmra.mxu0 %v1015
        %v1086 = vpop.f32.mrf.mxu0
        %v1087 = vadd.f32 %v989, %v1086
        %v1088 = vpop.f32.mrf.mxu0
        %v1089 = vadd.f32 %v993, %v1088
        %1090 = vmatmul.bf16.gmra.mxu0 %v1018
        %v1091 = vpop.f32.mrf.mxu0
        %v1092 = vadd.f32 %v997, %v1091
        %v1093 = vpop.f32.mrf.mxu0
        %v1094 = vadd.f32 %v1001, %v1093
        %1095 = vdwg.mxu0
        %1096 = vmatpush.bf16.msra.mxu0 0
        %1097 = vmatpush.bf16.msra.mxu0 0
        %1098 = vmatpush.bf16.msra.mxu0 0
        %1099 = vmatpush.bf16.msra.mxu0 0
        %1100 = vmatpush.bf16.msra.mxu0 0
        %1101 = vmatpush.bf16.msra.mxu0 0
        %1102 = vmatpush.bf16.msra.mxu0 %v983
        %1103 = vmatpush.bf16.msra.mxu0 %v975
        %1104 = vmatmul.bf16.gmra.mxu0 %v1015
        %v1105 = vpop.f32.mrf.mxu0
        %v1106 = vadd.f32 %v989, %v1105
        %v1107 = vpop.f32.mrf.mxu0
        %v1108 = vadd.f32 %v993, %v1107
        %1109 = vmatmul.bf16.gmra.mxu0 %v1018
        %v1110 = vpop.f32.mrf.mxu0
        %v1111 = vadd.f32 %v997, %v1110
        %v1112 = vpop.f32.mrf.mxu0
        %v1113 = vadd.f32 %v1001, %v1112
        %1114 = vdwg.mxu0
        %1115 = vmatpush.bf16.msra.mxu0 0
        %1116 = vmatpush.bf16.msra.mxu0 0
        %1117 = vmatpush.bf16.msra.mxu0 0
        %1118 = vmatpush.bf16.msra.mxu0 0
        %1119 = vmatpush.bf16.msra.mxu0 0
        %1120 = vmatpush.bf16.msra.mxu0 0
        %1121 = vmatpush.bf16.msra.mxu0 %v984
        %1122 = vmatpush.bf16.msra.mxu0 %v976
        %1123 = vmatmul.bf16.gmra.mxu0 %v1015
        %v1124 = vpop.f32.mrf.mxu0
        %v1125 = vadd.f32 %v989, %v1124
        %v1126 = vpop.f32.mrf.mxu0
        %v1127 = vadd.f32 %v993, %v1126
        %1128 = vmatmul.bf16.gmra.mxu0 %v1018
        %v1129 = vpop.f32.mrf.mxu0
        %v1130 = vadd.f32 %v997, %v1129
        %v1131 = vpop.f32.mrf.mxu0
        %v1132 = vadd.f32 %v1001, %v1131
        %1133 = vdwg.mxu0
        %1134 = vmatpush.bf16.msra.mxu0 0
        %1135 = vmatpush.bf16.msra.mxu0 0
        %1136 = vmatpush.bf16.msra.mxu0 0
        %1137 = vmatpush.bf16.msra.mxu0 0
        %1138 = vmatpush.bf16.msra.mxu0 0
        %1139 = vmatpush.bf16.msra.mxu0 0
        %1140 = vmatpush.bf16.msra.mxu0 %v985
        %1141 = vmatpush.bf16.msra.mxu0 %v977
        %1142 = vmatmul.bf16.gmra.mxu0 %v1015
        %v1143 = vpop.f32.mrf.mxu0
        %v1144 = vadd.f32 %v989, %v1143
        %v1145 = vpop.f32.mrf.mxu0
        %v1146 = vadd.f32 %v993, %v1145
        %1147 = vmatmul.bf16.gmra.mxu0 %v1018
        %v1148 = vpop.f32.mrf.mxu0
        %v1149 = vadd.f32 %v997, %v1148
        %v1150 = vpop.f32.mrf.mxu0
        %v1151 = vadd.f32 %v1001, %v1150
        %1152 = vdwg.mxu0
        %1153 = vmatpush.bf16.msra.mxu0 0
        %1154 = vmatpush.bf16.msra.mxu0 0
        %1155 = vmatpush.bf16.msra.mxu0 0
        %1156 = vmatpush.bf16.msra.mxu0 0
        %1157 = vmatpush.bf16.msra.mxu0 0
        %1158 = vmatpush.bf16.msra.mxu0 0
        %1159 = vmatpush.bf16.msra.mxu0 %v986
        %1160 = vmatpush.bf16.msra.mxu0 %v978
        %1161 = vmatmul.bf16.gmra.mxu0 %v1015
        %v1162 = vpop.f32.mrf.mxu0
        %v1163 = vadd.f32 %v989, %v1162
        %v1164 = vpop.f32.mrf.mxu0
        %v1165 = vadd.f32 %v993, %v1164
        %1166 = vmatmul.bf16.gmra.mxu0 %v1018
        %v1167 = vpop.f32.mrf.mxu0
        %v1168 = vadd.f32 %v997, %v1167
        %v1169 = vpop.f32.mrf.mxu0
        %v1170 = vadd.f32 %v1001, %v1169
        %1171 = vdwg.mxu0
        %v1172 = vadd.f32 %v1030, %v1032
        %v1173 = vadd.f32 %v1172, %v1035
        %v1174 = vadd.f32 %v1173, %v1037
        %v1175 = vrot.slane %v1174, 4
        %v1176 = vadd.f32 %v1174, %v1175
        %v1177 = vrot.slane %v1176, 2
        %v1178 = vadd.f32 %v1176, %v1177
        %v1179 = vrot.slane %v1178, 1
        %v1180 = vadd.f32 %v1178, %v1179
        %v1181 = vadd.f32 %v1049, %v1051
        %v1182 = vadd.f32 %v1181, %v1054
        %v1183 = vadd.f32 %v1182, %v1056
        %v1184 = vrot.slane %v1183, 4
        %v1185 = vadd.f32 %v1183, %v1184
        %v1186 = vrot.slane %v1185, 2
        %v1187 = vadd.f32 %v1185, %v1186
        %v1188 = vrot.slane %v1187, 1
        %v1189 = vadd.f32 %v1187, %v1188
        %v1190 = vadd.f32 %v1068, %v1070
        %v1191 = vadd.f32 %v1190, %v1073
        %v1192 = vadd.f32 %v1191, %v1075
        %v1193 = vrot.slane %v1192, 4
        %v1194 = vadd.f32 %v1192, %v1193
        %v1195 = vrot.slane %v1194, 2
        %v1196 = vadd.f32 %v1194, %v1195
        %v1197 = vrot.slane %v1196, 1
        %v1198 = vadd.f32 %v1196, %v1197
        %v1199 = vadd.f32 %v1087, %v1089
        %v1200 = vadd.f32 %v1199, %v1092
        %v1201 = vadd.f32 %v1200, %v1094
        %v1202 = vrot.slane %v1201, 4
        %v1203 = vadd.f32 %v1201, %v1202
        %v1204 = vrot.slane %v1203, 2
        %v1205 = vadd.f32 %v1203, %v1204
        %v1206 = vrot.slane %v1205, 1
        %v1207 = vadd.f32 %v1205, %v1206
        %v1208 = vadd.f32 %v1106, %v1108
        %v1209 = vadd.f32 %v1208, %v1111
        %v1210 = vadd.f32 %v1209, %v1113
        %v1211 = vrot.slane %v1210, 4
        %v1212 = vadd.f32 %v1210, %v1211
        %v1213 = vrot.slane %v1212, 2
        %v1214 = vadd.f32 %v1212, %v1213
        %v1215 = vrot.slane %v1214, 1
        %v1216 = vadd.f32 %v1214, %v1215
        %v1217 = vadd.f32 %v1125, %v1127
        %v1218 = vadd.f32 %v1217, %v1130
        %v1219 = vadd.f32 %v1218, %v1132
        %v1220 = vrot.slane %v1219, 4
        %v1221 = vadd.f32 %v1219, %v1220
        %v1222 = vrot.slane %v1221, 2
        %v1223 = vadd.f32 %v1221, %v1222
        %v1224 = vrot.slane %v1223, 1
        %v1225 = vadd.f32 %v1223, %v1224
        %v1226 = vadd.f32 %v1144, %v1146
        %v1227 = vadd.f32 %v1226, %v1149
        %v1228 = vadd.f32 %v1227, %v1151
        %v1229 = vrot.slane %v1228, 4
        %v1230 = vadd.f32 %v1228, %v1229
        %v1231 = vrot.slane %v1230, 2
        %v1232 = vadd.f32 %v1230, %v1231
        %v1233 = vrot.slane %v1232, 1
        %v1234 = vadd.f32 %v1232, %v1233
        %v1235 = vadd.f32 %v1163, %v1165
        %v1236 = vadd.f32 %v1235, %v1168
        %v1237 = vadd.f32 %v1236, %v1170
        %v1238 = vrot.slane %v1237, 4
        %v1239 = vadd.f32 %v1237, %v1238
        %v1240 = vrot.slane %v1239, 2
        %v1241 = vadd.f32 %v1239, %v1240
        %v1242 = vrot.slane %v1241, 1
        %v1243 = vadd.f32 %v1241, %v1242
        %v1244 = vmul.f32 %v1180, %v542
        %v1245 = vmul.f32 %v1189, %v542
        %v1246 = vmul.f32 %v1198, %v542
        %v1247 = vmul.f32 %v1207, %v542
        %v1248 = vmul.f32 %v1216, %v542
        %v1249 = vmul.f32 %v1225, %v542
        %v1250 = vmul.f32 %v1234, %v542
        %v1251 = vmul.f32 %v1243, %v542
        %v1252 = vmul.f32 %v1030, %v1030
        %v1253 = vmul.f32 %v1049, %v1049
        %v1254 = vmul.f32 %v1068, %v1068
        %v1255 = vmul.f32 %v1087, %v1087
        %v1256 = vmul.f32 %v1106, %v1106
        %v1257 = vmul.f32 %v1125, %v1125
        %v1258 = vmul.f32 %v1144, %v1144
        %v1259 = vmul.f32 %v1163, %v1163
        %v1260 = vmul.f32 %v1032, %v1032
        %v1261 = vmul.f32 %v1051, %v1051
        %v1262 = vmul.f32 %v1070, %v1070
        %v1263 = vmul.f32 %v1089, %v1089
        %v1264 = vmul.f32 %v1108, %v1108
        %v1265 = vmul.f32 %v1127, %v1127
        %v1266 = vmul.f32 %v1146, %v1146
        %v1267 = vmul.f32 %v1165, %v1165
        %v1268 = vmul.f32 %v1035, %v1035
        %v1269 = vmul.f32 %v1054, %v1054
        %v1270 = vmul.f32 %v1073, %v1073
        %v1271 = vmul.f32 %v1092, %v1092
        %v1272 = vmul.f32 %v1111, %v1111
        %v1273 = vmul.f32 %v1130, %v1130
        %v1274 = vmul.f32 %v1149, %v1149
        %v1275 = vmul.f32 %v1168, %v1168
        %v1276 = vmul.f32 %v1037, %v1037
        %v1277 = vmul.f32 %v1056, %v1056
        %v1278 = vmul.f32 %v1075, %v1075
        %v1279 = vmul.f32 %v1094, %v1094
        %v1280 = vmul.f32 %v1113, %v1113
        %v1281 = vmul.f32 %v1132, %v1132
        %v1282 = vmul.f32 %v1151, %v1151
        %v1283 = vmul.f32 %v1170, %v1170
        %v1284 = vadd.f32 %v1252, %v1260
        %v1285 = vadd.f32 %v1284, %v1268
        %v1286 = vadd.f32 %v1285, %v1276
        %v1287 = vrot.slane %v1286, 4
        %v1288 = vadd.f32 %v1286, %v1287
        %v1289 = vrot.slane %v1288, 2
        %v1290 = vadd.f32 %v1288, %v1289
        %v1291 = vrot.slane %v1290, 1
        %v1292 = vadd.f32 %v1290, %v1291
        %v1293 = vadd.f32 %v1253, %v1261
        %v1294 = vadd.f32 %v1293, %v1269
        %v1295 = vadd.f32 %v1294, %v1277
        %v1296 = vrot.slane %v1295, 4
        %v1297 = vadd.f32 %v1295, %v1296
        %v1298 = vrot.slane %v1297, 2
        %v1299 = vadd.f32 %v1297, %v1298
        %v1300 = vrot.slane %v1299, 1
        %v1301 = vadd.f32 %v1299, %v1300
        %v1302 = vadd.f32 %v1254, %v1262
        %v1303 = vadd.f32 %v1302, %v1270
        %v1304 = vadd.f32 %v1303, %v1278
        %v1305 = vrot.slane %v1304, 4
        %v1306 = vadd.f32 %v1304, %v1305
        %v1307 = vrot.slane %v1306, 2
        %v1308 = vadd.f32 %v1306, %v1307
        %v1309 = vrot.slane %v1308, 1
        %v1310 = vadd.f32 %v1308, %v1309
        %v1311 = vadd.f32 %v1255, %v1263
        %v1312 = vadd.f32 %v1311, %v1271
        %v1313 = vadd.f32 %v1312, %v1279
        %v1314 = vrot.slane %v1313, 4
        %v1315 = vadd.f32 %v1313, %v1314
        %v1316 = vrot.slane %v1315, 2
        %v1317 = vadd.f32 %v1315, %v1316
        %v1318 = vrot.slane %v1317, 1
        %v1319 = vadd.f32 %v1317, %v1318
        %v1320 = vadd.f32 %v1256, %v1264
        %v1321 = vadd.f32 %v1320, %v1272
        %v1322 = vadd.f32 %v1321, %v1280
        %v1323 = vrot.slane %v1322, 4
        %v1324 = vadd.f32 %v1322, %v1323
        %v1325 = vrot.slane %v1324, 2
        %v1326 = vadd.f32 %v1324, %v1325
        %v1327 = vrot.slane %v1326, 1
        %v1328 = vadd.f32 %v1326, %v1327
        %v1329 = vadd.f32 %v1257, %v1265
        %v1330 = vadd.f32 %v1329, %v1273
        %v1331 = vadd.f32 %v1330, %v1281
        %v1332 = vrot.slane %v1331, 4
        %v1333 = vadd.f32 %v1331, %v1332
        %v1334 = vrot.slane %v1333, 2
        %v1335 = vadd.f32 %v1333, %v1334
        %v1336 = vrot.slane %v1335, 1
        %v1337 = vadd.f32 %v1335, %v1336
        %v1338 = vadd.f32 %v1258, %v1266
        %v1339 = vadd.f32 %v1338, %v1274
        %v1340 = vadd.f32 %v1339, %v1282
        %v1341 = vrot.slane %v1340, 4
        %v1342 = vadd.f32 %v1340, %v1341
        %v1343 = vrot.slane %v1342, 2
        %v1344 = vadd.f32 %v1342, %v1343
        %v1345 = vrot.slane %v1344, 1
        %v1346 = vadd.f32 %v1344, %v1345
        %v1347 = vadd.f32 %v1259, %v1267
        %v1348 = vadd.f32 %v1347, %v1275
        %v1349 = vadd.f32 %v1348, %v1283
        %v1350 = vrot.slane %v1349, 4
        %v1351 = vadd.f32 %v1349, %v1350
        %v1352 = vrot.slane %v1351, 2
        %v1353 = vadd.f32 %v1351, %v1352
        %v1354 = vrot.slane %v1353, 1
        %v1355 = vadd.f32 %v1353, %v1354
        %v1356 = vmul.f32 %v1292, %v542
        %v1357 = vmul.f32 %v1301, %v542
        %v1358 = vmul.f32 %v1310, %v542
        %v1359 = vmul.f32 %v1319, %v542
        %v1360 = vmul.f32 %v1328, %v542
        %v1361 = vmul.f32 %v1337, %v542
        %v1362 = vmul.f32 %v1346, %v542
        %v1363 = vmul.f32 %v1355, %v542
        %v1364 = vmul.f32 %v1244, %v1244
        %v1365 = vmul.f32 %v1245, %v1245
        %v1366 = vmul.f32 %v1246, %v1246
        %v1367 = vmul.f32 %v1247, %v1247
        %v1368 = vmul.f32 %v1248, %v1248
        %v1369 = vmul.f32 %v1249, %v1249
        %v1370 = vmul.f32 %v1250, %v1250
        %v1371 = vmul.f32 %v1251, %v1251
        %v1372 = vsub.f32 %v1356, %v1364
        %v1373 = vsub.f32 %v1357, %v1365
        %v1374 = vsub.f32 %v1358, %v1366
        %v1375 = vsub.f32 %v1359, %v1367
        %v1376 = vsub.f32 %v1360, %v1368
        %v1377 = vsub.f32 %v1361, %v1369
        %v1378 = vsub.f32 %v1362, %v1370
        %v1379 = vsub.f32 %v1363, %v1371
        %v1380 = vmax.f32 %v1372, 0.0
        %v1381 = vmax.f32 %v1373, 0.0
        %v1382 = vmax.f32 %v1374, 0.0
        %v1383 = vmax.f32 %v1375, 0.0
        %v1384 = vmax.f32 %v1376, 0.0
        %v1385 = vmax.f32 %v1377, 0.0
        %v1386 = vmax.f32 %v1378, 0.0
        %v1387 = vmax.f32 %v1379, 0.0
        %v1388 = vadd.f32 %v1380, 1e-05
        %v1389 = vadd.f32 %v1381, 1e-05
        %v1390 = vadd.f32 %v1382, 1e-05
        %v1391 = vadd.f32 %v1383, 1e-05
        %v1392 = vadd.f32 %v1384, 1e-05
        %v1393 = vadd.f32 %v1385, 1e-05
        %v1394 = vadd.f32 %v1386, 1e-05
        %v1395 = vadd.f32 %v1387, 1e-05
        %v1396 = vrsqrt.pop %v1388
        %v1397 = vmul.f32 %v1396, %v1388
        %v1398 = vmul.f32 %v1397, %v1396
        %v1399 = vmul.f32 0.5, %v1398
        %v1400 = vsub.f32 1.5, %v1399
        %v1401 = vmul.f32 %v1396, %v1400
        %vm1402 = vweird.f32 %v1388
        %vm1403 = vweird.f32 %v1396
        %vm1404 = vmor %vm1402, %vm1403
        %v1405 = vsel %vm1404, %v1396, %v1401
        %v1406 = vrsqrt.pop %v1389
        %v1407 = vmul.f32 %v1406, %v1389
        %v1408 = vmul.f32 %v1407, %v1406
        %v1409 = vmul.f32 0.5, %v1408
        %v1410 = vsub.f32 1.5, %v1409
        %v1411 = vmul.f32 %v1406, %v1410
        %vm1412 = vweird.f32 %v1389
        %vm1413 = vweird.f32 %v1406
        %vm1414 = vmor %vm1412, %vm1413
        %v1415 = vsel %vm1414, %v1406, %v1411
        %v1416 = vrsqrt.pop %v1390
        %v1417 = vmul.f32 %v1416, %v1390
        %v1418 = vmul.f32 %v1417, %v1416
        %v1419 = vmul.f32 0.5, %v1418
        %v1420 = vsub.f32 1.5, %v1419
        %v1421 = vmul.f32 %v1416, %v1420
        %vm1422 = vweird.f32 %v1390
        %vm1423 = vweird.f32 %v1416
        %vm1424 = vmor %vm1422, %vm1423
        %v1425 = vsel %vm1424, %v1416, %v1421
        %v1426 = vrsqrt.pop %v1391
        %v1427 = vmul.f32 %v1426, %v1391
        %v1428 = vmul.f32 %v1427, %v1426
        %v1429 = vmul.f32 0.5, %v1428
        %v1430 = vsub.f32 1.5, %v1429
        %v1431 = vmul.f32 %v1426, %v1430
        %vm1432 = vweird.f32 %v1391
        %vm1433 = vweird.f32 %v1426
        %vm1434 = vmor %vm1432, %vm1433
        %v1435 = vsel %vm1434, %v1426, %v1431
        %v1436 = vrsqrt.pop %v1392
        %v1437 = vmul.f32 %v1436, %v1392
        %v1438 = vmul.f32 %v1437, %v1436
        %v1439 = vmul.f32 0.5, %v1438
        %v1440 = vsub.f32 1.5, %v1439
        %v1441 = vmul.f32 %v1436, %v1440
        %vm1442 = vweird.f32 %v1392
        %vm1443 = vweird.f32 %v1436
        %vm1444 = vmor %vm1442, %vm1443
        %v1445 = vsel %vm1444, %v1436, %v1441
        %v1446 = vrsqrt.pop %v1393
        %v1447 = vmul.f32 %v1446, %v1393
        %v1448 = vmul.f32 %v1447, %v1446
        %v1449 = vmul.f32 0.5, %v1448
        %v1450 = vsub.f32 1.5, %v1449
        %v1451 = vmul.f32 %v1446, %v1450
        %vm1452 = vweird.f32 %v1393
        %vm1453 = vweird.f32 %v1446
        %vm1454 = vmor %vm1452, %vm1453
        %v1455 = vsel %vm1454, %v1446, %v1451
        %v1456 = vrsqrt.pop %v1394
        %v1457 = vmul.f32 %v1456, %v1394
        %v1458 = vmul.f32 %v1457, %v1456
        %v1459 = vmul.f32 0.5, %v1458
        %v1460 = vsub.f32 1.5, %v1459
        %v1461 = vmul.f32 %v1456, %v1460
        %vm1462 = vweird.f32 %v1394
        %vm1463 = vweird.f32 %v1456
        %vm1464 = vmor %vm1462, %vm1463
        %v1465 = vsel %vm1464, %v1456, %v1461
        %v1466 = vrsqrt.pop %v1395
        %v1467 = vmul.f32 %v1466, %v1395
        %v1468 = vmul.f32 %v1467, %v1466
        %v1469 = vmul.f32 0.5, %v1468
        %v1470 = vsub.f32 1.5, %v1469
        %v1471 = vmul.f32 %v1466, %v1470
        %vm1472 = vweird.f32 %v1395
        %vm1473 = vweird.f32 %v1466
        %vm1474 = vmor %vm1472, %vm1473
        %v1475 = vsel %vm1474, %v1466, %v1471
        %v1476 = vsub.f32 %v1030, %v1244
        %v1477 = vsub.f32 %v1049, %v1245
        %v1478 = vsub.f32 %v1068, %v1246
        %v1479 = vsub.f32 %v1087, %v1247
        %v1480 = vsub.f32 %v1106, %v1248
        %v1481 = vsub.f32 %v1125, %v1249
        %v1482 = vsub.f32 %v1144, %v1250
        %v1483 = vsub.f32 %v1163, %v1251
        %v1484 = vsub.f32 %v1032, %v1244
        %v1485 = vsub.f32 %v1051, %v1245
        %v1486 = vsub.f32 %v1070, %v1246
        %v1487 = vsub.f32 %v1089, %v1247
        %v1488 = vsub.f32 %v1108, %v1248
        %v1489 = vsub.f32 %v1127, %v1249
        %v1490 = vsub.f32 %v1146, %v1250
        %v1491 = vsub.f32 %v1165, %v1251
        %v1492 = vsub.f32 %v1035, %v1244
        %v1493 = vsub.f32 %v1054, %v1245
        %v1494 = vsub.f32 %v1073, %v1246
        %v1495 = vsub.f32 %v1092, %v1247
        %v1496 = vsub.f32 %v1111, %v1248
        %v1497 = vsub.f32 %v1130, %v1249
        %v1498 = vsub.f32 %v1149, %v1250
        %v1499 = vsub.f32 %v1168, %v1251
        %v1500 = vsub.f32 %v1037, %v1244
        %v1501 = vsub.f32 %v1056, %v1245
        %v1502 = vsub.f32 %v1075, %v1246
        %v1503 = vsub.f32 %v1094, %v1247
        %v1504 = vsub.f32 %v1113, %v1248
        %v1505 = vsub.f32 %v1132, %v1249
        %v1506 = vsub.f32 %v1151, %v1250
        %v1507 = vsub.f32 %v1170, %v1251
        %v1508 = vmul.f32 %v1476, %v1405
        %v1509 = vmul.f32 %v1477, %v1415
        %v1510 = vmul.f32 %v1478, %v1425
        %v1511 = vmul.f32 %v1479, %v1435
        %v1512 = vmul.f32 %v1480, %v1445
        %v1513 = vmul.f32 %v1481, %v1455
        %v1514 = vmul.f32 %v1482, %v1465
        %v1515 = vmul.f32 %v1483, %v1475
        %v1516 = vmul.f32 %v1484, %v1405
        %v1517 = vmul.f32 %v1485, %v1415
        %v1518 = vmul.f32 %v1486, %v1425
        %v1519 = vmul.f32 %v1487, %v1435
        %v1520 = vmul.f32 %v1488, %v1445
        %v1521 = vmul.f32 %v1489, %v1455
        %v1522 = vmul.f32 %v1490, %v1465
        %v1523 = vmul.f32 %v1491, %v1475
        %v1524 = vmul.f32 %v1492, %v1405
        %v1525 = vmul.f32 %v1493, %v1415
        %v1526 = vmul.f32 %v1494, %v1425
        %v1527 = vmul.f32 %v1495, %v1435
        %v1528 = vmul.f32 %v1496, %v1445
        %v1529 = vmul.f32 %v1497, %v1455
        %v1530 = vmul.f32 %v1498, %v1465
        %v1531 = vmul.f32 %v1499, %v1475
        %v1532 = vmul.f32 %v1500, %v1405
        %v1533 = vmul.f32 %v1501, %v1415
        %v1534 = vmul.f32 %v1502, %v1425
        %v1535 = vmul.f32 %v1503, %v1435
        %v1536 = vmul.f32 %v1504, %v1445
        %v1537 = vmul.f32 %v1505, %v1455
        %v1538 = vmul.f32 %v1506, %v1465
        %v1539 = vmul.f32 %v1507, %v1475
        %1540 = vset.pattern.permute.xlu0 4
        %1541 = vperm.xlu0 %1540, %v218
        %v1542 = vpop.permute.xlu0 %1541
        %1544 = vset.pattern.permute.xlu0 4
        %1545 = vperm.xlu0 %1544, %v219
        %v1546 = vpop.permute.xlu0 %1545
        %1548 = vset.pattern.permute.xlu0 4
        %1549 = vperm.xlu0 %1548, %v220
        %v1550 = vpop.permute.xlu0 %1549
        %1552 = vset.pattern.permute.xlu0 4
        %1553 = vperm.xlu0 %1552, %v221
        %v1554 = vpop.permute.xlu0 %1553
        %v1556 = vmul.f32 %v1508, %v1542
        %v1557 = vmul.f32 %v1509, %v1542
        %v1558 = vmul.f32 %v1510, %v1542
        %v1559 = vmul.f32 %v1511, %v1542
        %v1560 = vmul.f32 %v1512, %v1542
        %v1561 = vmul.f32 %v1513, %v1542
        %v1562 = vmul.f32 %v1514, %v1542
        %v1563 = vmul.f32 %v1515, %v1542
        %v1564 = vmul.f32 %v1516, %v1546
        %v1565 = vmul.f32 %v1517, %v1546
        %v1566 = vmul.f32 %v1518, %v1546
        %v1567 = vmul.f32 %v1519, %v1546
        %v1568 = vmul.f32 %v1520, %v1546
        %v1569 = vmul.f32 %v1521, %v1546
        %v1570 = vmul.f32 %v1522, %v1546
        %v1571 = vmul.f32 %v1523, %v1546
        %v1572 = vmul.f32 %v1524, %v1550
        %v1573 = vmul.f32 %v1525, %v1550
        %v1574 = vmul.f32 %v1526, %v1550
        %v1575 = vmul.f32 %v1527, %v1550
        %v1576 = vmul.f32 %v1528, %v1550
        %v1577 = vmul.f32 %v1529, %v1550
        %v1578 = vmul.f32 %v1530, %v1550
        %v1579 = vmul.f32 %v1531, %v1550
        %v1580 = vmul.f32 %v1532, %v1554
        %v1581 = vmul.f32 %v1533, %v1554
        %v1582 = vmul.f32 %v1534, %v1554
        %v1583 = vmul.f32 %v1535, %v1554
        %v1584 = vmul.f32 %v1536, %v1554
        %v1585 = vmul.f32 %v1537, %v1554
        %v1586 = vmul.f32 %v1538, %v1554
        %v1587 = vmul.f32 %v1539, %v1554
        %1588 = vset.pattern.permute.xlu0 5
        %1589 = vperm.xlu0 %1588, %v218
        %v1590 = vpop.permute.xlu0 %1589
        %1592 = vset.pattern.permute.xlu0 5
        %1593 = vperm.xlu0 %1592, %v219
        %v1594 = vpop.permute.xlu0 %1593
        %1596 = vset.pattern.permute.xlu0 5
        %1597 = vperm.xlu0 %1596, %v220
        %v1598 = vpop.permute.xlu0 %1597
        %1600 = vset.pattern.permute.xlu0 5
        %1601 = vperm.xlu0 %1600, %v221
        %v1602 = vpop.permute.xlu0 %1601
        %v1604 = vadd.f32 %v1556, %v1590
        %v1605 = vadd.f32 %v1557, %v1590
        %v1606 = vadd.f32 %v1558, %v1590
        %v1607 = vadd.f32 %v1559, %v1590
        %v1608 = vadd.f32 %v1560, %v1590
        %v1609 = vadd.f32 %v1561, %v1590
        %v1610 = vadd.f32 %v1562, %v1590
        %v1611 = vadd.f32 %v1563, %v1590
        %v1612 = vadd.f32 %v1564, %v1594
        %v1613 = vadd.f32 %v1565, %v1594
        %v1614 = vadd.f32 %v1566, %v1594
        %v1615 = vadd.f32 %v1567, %v1594
        %v1616 = vadd.f32 %v1568, %v1594
        %v1617 = vadd.f32 %v1569, %v1594
        %v1618 = vadd.f32 %v1570, %v1594
        %v1619 = vadd.f32 %v1571, %v1594
        %v1620 = vadd.f32 %v1572, %v1598
        %v1621 = vadd.f32 %v1573, %v1598
        %v1622 = vadd.f32 %v1574, %v1598
        %v1623 = vadd.f32 %v1575, %v1598
        %v1624 = vadd.f32 %v1576, %v1598
        %v1625 = vadd.f32 %v1577, %v1598
        %v1626 = vadd.f32 %v1578, %v1598
        %v1627 = vadd.f32 %v1579, %v1598
        %v1628 = vadd.f32 %v1580, %v1602
        %v1629 = vadd.f32 %v1581, %v1602
        %v1630 = vadd.f32 %v1582, %v1602
        %v1631 = vadd.f32 %v1583, %v1602
        %v1632 = vadd.f32 %v1584, %v1602
        %v1633 = vadd.f32 %v1585, %v1602
        %v1634 = vadd.f32 %v1586, %v1602
        %v1635 = vadd.f32 %v1587, %v1602
        %v1636 = vtanh.pop %v1604
        %v1637 = vtanh.pop %v1605
        %v1638 = vtanh.pop %v1606
        %v1639 = vtanh.pop %v1607
        %v1640 = vtanh.pop %v1608
        %v1641 = vtanh.pop %v1609
        %v1642 = vtanh.pop %v1610
        %v1643 = vtanh.pop %v1611
        %v1644 = vtanh.pop %v1612
        %v1645 = vtanh.pop %v1613
        %v1646 = vtanh.pop %v1614
        %v1647 = vtanh.pop %v1615
        %v1648 = vtanh.pop %v1616
        %v1649 = vtanh.pop %v1617
        %v1650 = vtanh.pop %v1618
        %v1651 = vtanh.pop %v1619
        %v1652 = vtanh.pop %v1620
        %v1653 = vtanh.pop %v1621
        %v1654 = vtanh.pop %v1622
        %v1655 = vtanh.pop %v1623
        %v1656 = vtanh.pop %v1624
        %v1657 = vtanh.pop %v1625
        %v1658 = vtanh.pop %v1626
        %v1659 = vtanh.pop %v1627
        %v1660 = vtanh.pop %v1628
        %v1661 = vtanh.pop %v1629
        %v1662 = vtanh.pop %v1630
        %v1663 = vtanh.pop %v1631
        %v1664 = vtanh.pop %v1632
        %v1665 = vtanh.pop %v1633
        %v1666 = vtanh.pop %v1634
        %v1667 = vtanh.pop %v1635
        %1668 = vset.pattern.permute.xlu0 6
        %1669 = vperm.xlu0 %1668, %v218
        %v1670 = vpop.permute.xlu0 %1669
        %1672 = vset.pattern.permute.xlu0 6
        %1673 = vperm.xlu0 %1672, %v219
        %v1674 = vpop.permute.xlu0 %1673
        %1676 = vset.pattern.permute.xlu0 6
        %1677 = vperm.xlu0 %1676, %v220
        %v1678 = vpop.permute.xlu0 %1677
        %1680 = vset.pattern.permute.xlu0 6
        %1681 = vperm.xlu0 %1680, %v221
        %v1682 = vpop.permute.xlu0 %1681
        %v1684 = vmul.f32 %v1636, %v1670
        %v1685 = vmul.f32 %v1637, %v1670
        %v1686 = vmul.f32 %v1638, %v1670
        %v1687 = vmul.f32 %v1639, %v1670
        %v1688 = vmul.f32 %v1640, %v1670
        %v1689 = vmul.f32 %v1641, %v1670
        %v1690 = vmul.f32 %v1642, %v1670
        %v1691 = vmul.f32 %v1643, %v1670
        %v1692 = vmul.f32 %v1644, %v1674
        %v1693 = vmul.f32 %v1645, %v1674
        %v1694 = vmul.f32 %v1646, %v1674
        %v1695 = vmul.f32 %v1647, %v1674
        %v1696 = vmul.f32 %v1648, %v1674
        %v1697 = vmul.f32 %v1649, %v1674
        %v1698 = vmul.f32 %v1650, %v1674
        %v1699 = vmul.f32 %v1651, %v1674
        %v1700 = vmul.f32 %v1652, %v1678
        %v1701 = vmul.f32 %v1653, %v1678
        %v1702 = vmul.f32 %v1654, %v1678
        %v1703 = vmul.f32 %v1655, %v1678
        %v1704 = vmul.f32 %v1656, %v1678
        %v1705 = vmul.f32 %v1657, %v1678
        %v1706 = vmul.f32 %v1658, %v1678
        %v1707 = vmul.f32 %v1659, %v1678
        %v1708 = vmul.f32 %v1660, %v1682
        %v1709 = vmul.f32 %v1661, %v1682
        %v1710 = vmul.f32 %v1662, %v1682
        %v1711 = vmul.f32 %v1663, %v1682
        %v1712 = vmul.f32 %v1664, %v1682
        %v1713 = vmul.f32 %v1665, %v1682
        %v1714 = vmul.f32 %v1666, %v1682
        %v1715 = vmul.f32 %v1667, %v1682
        %v1716 = vadd.f32 %v1684, %v1692
        %v1717 = vadd.f32 %v1716, %v1700
        %v1718 = vadd.f32 %v1717, %v1708
        %v1719 = vrot.slane %v1718, 4
        %v1720 = vadd.f32 %v1718, %v1719
        %v1721 = vrot.slane %v1720, 2
        %v1722 = vadd.f32 %v1720, %v1721
        %v1723 = vrot.slane %v1722, 1
        %v1724 = vadd.f32 %v1722, %v1723
        %v1725 = vadd.f32 %v1685, %v1693
        %v1726 = vadd.f32 %v1725, %v1701
        %v1727 = vadd.f32 %v1726, %v1709
        %v1728 = vrot.slane %v1727, 4
        %v1729 = vadd.f32 %v1727, %v1728
        %v1730 = vrot.slane %v1729, 2
        %v1731 = vadd.f32 %v1729, %v1730
        %v1732 = vrot.slane %v1731, 1
        %v1733 = vadd.f32 %v1731, %v1732
        %v1734 = vadd.f32 %v1686, %v1694
        %v1735 = vadd.f32 %v1734, %v1702
        %v1736 = vadd.f32 %v1735, %v1710
        %v1737 = vrot.slane %v1736, 4
        %v1738 = vadd.f32 %v1736, %v1737
        %v1739 = vrot.slane %v1738, 2
        %v1740 = vadd.f32 %v1738, %v1739
        %v1741 = vrot.slane %v1740, 1
        %v1742 = vadd.f32 %v1740, %v1741
        %v1743 = vadd.f32 %v1687, %v1695
        %v1744 = vadd.f32 %v1743, %v1703
        %v1745 = vadd.f32 %v1744, %v1711
        %v1746 = vrot.slane %v1745, 4
        %v1747 = vadd.f32 %v1745, %v1746
        %v1748 = vrot.slane %v1747, 2
        %v1749 = vadd.f32 %v1747, %v1748
        %v1750 = vrot.slane %v1749, 1
        %v1751 = vadd.f32 %v1749, %v1750
        %v1752 = vadd.f32 %v1688, %v1696
        %v1753 = vadd.f32 %v1752, %v1704
        %v1754 = vadd.f32 %v1753, %v1712
        %v1755 = vrot.slane %v1754, 4
        %v1756 = vadd.f32 %v1754, %v1755
        %v1757 = vrot.slane %v1756, 2
        %v1758 = vadd.f32 %v1756, %v1757
        %v1759 = vrot.slane %v1758, 1
        %v1760 = vadd.f32 %v1758, %v1759
        %v1761 = vadd.f32 %v1689, %v1697
        %v1762 = vadd.f32 %v1761, %v1705
        %v1763 = vadd.f32 %v1762, %v1713
        %v1764 = vrot.slane %v1763, 4
        %v1765 = vadd.f32 %v1763, %v1764
        %v1766 = vrot.slane %v1765, 2
        %v1767 = vadd.f32 %v1765, %v1766
        %v1768 = vrot.slane %v1767, 1
        %v1769 = vadd.f32 %v1767, %v1768
        %v1770 = vadd.f32 %v1690, %v1698
        %v1771 = vadd.f32 %v1770, %v1706
        %v1772 = vadd.f32 %v1771, %v1714
        %v1773 = vrot.slane %v1772, 4
        %v1774 = vadd.f32 %v1772, %v1773
        %v1775 = vrot.slane %v1774, 2
        %v1776 = vadd.f32 %v1774, %v1775
        %v1777 = vrot.slane %v1776, 1
        %v1778 = vadd.f32 %v1776, %v1777
        %v1779 = vadd.f32 %v1691, %v1699
        %v1780 = vadd.f32 %v1779, %v1707
        %v1781 = vadd.f32 %v1780, %v1715
        %v1782 = vrot.slane %v1781, 4
        %v1783 = vadd.f32 %v1781, %v1782
        %v1784 = vrot.slane %v1783, 2
        %v1785 = vadd.f32 %v1783, %v1784
        %v1786 = vrot.slane %v1785, 1
        %v1787 = vadd.f32 %v1785, %v1786
        %1788 = vset.pattern.permute.xlu0 7
        %1789 = vperm.xlu0 %1788, %v218
        %v1790 = vpop.permute.xlu0 %1789
        %v1792 = vadd.f32 %v1724, %v1790
        %v1793 = vadd.f32 %v1733, %v1790
        %v1794 = vadd.f32 %v1742, %v1790
        %v1795 = vadd.f32 %v1751, %v1790
        %v1796 = vadd.f32 %v1760, %v1790
        %v1797 = vadd.f32 %v1769, %v1790
        %v1798 = vadd.f32 %v1778, %v1790
        %v1799 = vadd.f32 %v1787, %v1790
        %v1808 = vrot.slane %v1793, 7
        %v1809 = vrot.slane %v1794, 6
        %v1810 = vrot.slane %v1795, 5
        %v1811 = vrot.slane %v1796, 4
        %v1812 = vrot.slane %v1797, 3
        %v1813 = vrot.slane %v1798, 2
        %v1814 = vrot.slane %v1799, 1
        %vm1815 = vcmask 1040384
        %v1816 = vsel %vm1815, %v1792, %v1808
        %vm1817 = vcmask 1042434
        %v1818 = vsel %vm1817, %v1809, %v1810
        %vm1819 = vcmask 1041408
        %v1820 = vsel %vm1819, %v1816, %v1818
        %vm1821 = vcmask 1044484
        %v1822 = vsel %vm1821, %v1811, %v1812
        %vm1823 = vcmask 1046534
        %v1824 = vsel %vm1823, %v1813, %v1814
        %vm1825 = vcmask 1045508
        %v1826 = vsel %vm1825, %v1822, %v1824
        %v1827 = vsel %vm287, %v1820, %v1826
        %1829 = vst [vmem:[%s215] sm:$0xff] %v1827
        %s1830 = sand.u32 %s118, 1
        %s1831 = scalar_lea.sflag [#allocation4], %s1830
        %s1832 = sand.u32 %s118, 1
        %s1833 = smul.addr %s1832, 8
        %s1834 = scalar_lea.vmem [#allocation5], %s1833
        // Predicated region
        $region41: #{tpu_custom_call.1} parent=35 // pred_check
          %p1835 = pneg %p128
        $region42: #{tpu_custom_call.1} parent=35 // pred_check_branch
          %1837 = sbr.rel (%p1835) target = $region44
        $region43: #{tpu_custom_call.1} parent=35 // pred_region
          %1839 = vsyncadd %s1831, 0
          %s1840 = smul.addr %s21, 8
          %s1841 = scalar_lea.hbm %s4, %s1840
          %s1843 = sshll.u32 %s1834, 4
          %s1844 = int_to_ptr.vmem [resolvable:$true] %s1843
          %s1845 = sshll.u32 %s1841, 4
          %s1846 = int_to_ptr.hbm [resolvable:$true] %s1845
          %1848 = dma.vmem_to_hbm [thread:$0]  %s1844, 128, %s1846, %s1831
        $region44: #{tpu_custom_call.1} parent=35 // pred_fallthru
          _
      $region36: #{tpu_custom_call.1} parent=5 // pred_fallthru
        _
      %p1849 = scmp.le.s32.totalorder 2, %s16
      // Predicated region
      $region45: #{tpu_custom_call.1} parent=5 // pred_check
        %p1850 = pneg %p1849
      $region46: #{tpu_custom_call.1} parent=5 // pred_check_branch
        %1852 = sbr.rel (%p1850) target = $region48
      $region47: #{tpu_custom_call.1} parent=5 // pred_region
        %s1853 = ssub.s32 %s16, 2
        // Predicated region
        $region49: #{tpu_custom_call.1} parent=47 // pred_check
          %p1854 = pneg %p134
        $region50: #{tpu_custom_call.1} parent=47 // pred_check_branch
          %1856 = sbr.rel (%p1854) target = $region52
        $region51: #{tpu_custom_call.1} parent=47 // pred_region
          %s1857 = sand.u32 %s119, 1
          %s1858 = scalar_lea.sflag [#allocation4], %s1857
          %s1859 = sand.u32 %s119, 1
          %s1860 = smul.addr %s1859, 8
          %s1861 = scalar_lea.vmem [#allocation5], %s1860
          %1863 = dma.done %s1858, 128
        $region52: #{tpu_custom_call.1} parent=47 // pred_fallthru
          _
      $region48: #{tpu_custom_call.1} parent=5 // pred_fallthru
        _
    $region6: #{tpu_custom_call.1} parent=1 // loop_footer
      %s20 = sadd.s32 1, %s16
    $region7: #{tpu_custom_call.1} parent=1 // loop_footer_branch
      %15 = sbr.rel target = $region3
    $region8: #{tpu_custom_call.1} parent=1 // loop_exit
      _
    %1864 = vsyncpa [#allocation3], 1
    %s1865 = scalar_lea.sflag [#allocation3], 1
    %1866 = vsyncpa %s1865, 1
    %1867 = vsyncpa [#allocation4], 1
    %s1868 = scalar_lea.sflag [#allocation4], 1
    %1869 = vsyncpa %s1868, 1

</llo_original>
